<compile_context>
chip_gen: v5e
topology: v5e:2x2
jax: 0.10.0
libtpu: 0.0.40
codegen_flags: <defaults>
</compile_context>

<pallas_src>
import jax
import jax.numpy as jnp
from jax.experimental import pallas as pl
from jax.experimental.pallas import tpu as pltpu

LANE = 128


def _round_up(x, m):
    return ((x + m - 1) // m) * m


def basic_conv2d_forward(x_nchw, params, padding=1, eps=1e-5):
    """BasicConv2d forward: conv(k,k,stride=1,no bias) -> BN(batch stats) -> ReLU.

    x_nchw: (N, Cin, H, W); params["w"]: (kh, kw, Cin, Cout).
    Returns (N, Cout, Ho, Wo) float32.
    """
    w, gamma, beta = params["w"], params["gamma"], params["beta"]
    KH, KW, Cin_w, Cout = w.shape
    N, Cin, H, W = x_nchw.shape
    assert Cin == Cin_w
    Ho = H + 2 * padding - KH + 1
    Wo = W + 2 * padding - KW + 1

    Cin_p = _round_up(Cin, LANE)              # lane-pad channels (feedback item 11)
    Cout_p = _round_up(Cout, LANE)
    K = KH * KW * Cin_p                       # single-contraction size

    # ---- wrapper-side layout glue (XLA) -------------------------------------
    # NCHW -> NHWC, zero-pad spatial halo, pad channels to lane width.
    x = jnp.transpose(x_nchw, (0, 2, 3, 1)).astype(jnp.float32)
    x = jnp.pad(x, ((0, 0), (padding, padding), (padding, padding),
                    (0, Cin_p - Cin)))
    # (kh, kw, Cin, Cout) -> lane-padded -> (K, Cout_p).  Row order (kh, kw, ci)
    # matches the tap order used to build the im2col patches in the kernel.
    w_mat = jnp.pad(w.astype(jnp.float32),
                    ((0, 0), (0, 0), (0, Cin_p - Cin), (0, Cout_p - Cout)))
    w_mat = w_mat.reshape(K, Cout_p)
    gamma_p = jnp.pad(gamma.astype(jnp.float32), (0, Cout_p - Cout))
    beta_p = jnp.pad(beta.astype(jnp.float32), (0, Cout_p - Cout))

    # ---- kernel 1: conv as one matmul + fused BN partial statistics ---------
    def conv_stats_kernel(x_ref, w_ref, y_ref, sum_ref, ssq_ref):
        x_pad = x_ref[0]                                  # (H+2p, W+2p, Cin_p)
        taps = []
        for kh in range(KH):                              # static unroll: k*k taps
            for kw in range(KW):
                # Lane-dense slice (minor dim = Cin_p = 128k); reshape keeps
                # the minor dim so it is a cheap major-dim merge.
                taps.append(
                    x_pad[kh:kh + Ho, kw:kw + Wo, :].reshape(Ho * Wo, Cin_p))
        patches = jnp.concatenate(taps, axis=1)           # (Ho*Wo, K) im2col
        y = jnp.dot(patches, w_ref[...],                  # single MXU contraction
                    preferred_element_type=jnp.float32)   # (Ho*Wo, Cout_p)
        y_ref[0] = y
        # Per-image BN partial sums: avoids re-reading the activation from HBM
        # just to compute mean/var in the wrapper.
        sum_ref[0] = jnp.sum(y, axis=0, keepdims=True)
        ssq_ref[0] = jnp.sum(y * y, axis=0, keepdims=True)

    y, psum, pssq = pl.pallas_call(
        conv_stats_kernel,
        out_shape=(
            jax.ShapeDtypeStruct((N, Ho * Wo, Cout_p), jnp.float32),
            jax.ShapeDtypeStruct((N, 1, Cout_p), jnp.float32),
            jax.ShapeDtypeStruct((N, 1, Cout_p), jnp.float32),
        ),
        grid_spec=pltpu.PrefetchScalarGridSpec(
            num_scalar_prefetch=0,
            grid=(N,),
            in_specs=[
                pl.BlockSpec((1, H + 2 * padding, W + 2 * padding, Cin_p),
                             lambda n: (n, 0, 0, 0)),
                pl.BlockSpec((K, Cout_p), lambda n: (0, 0)),
            ],
            out_specs=(
                pl.BlockSpec((1, Ho * Wo, Cout_p), lambda n: (n, 0, 0)),
                pl.BlockSpec((1, 1, Cout_p), lambda n: (n, 0, 0)),
                pl.BlockSpec((1, 1, Cout_p), lambda n: (n, 0, 0)),
            ),
        ),
        compiler_params=pltpu.CompilerParams(
            dimension_semantics=("parallel",)),
    )(x, w_mat)

    # ---- fold BN (training-mode batch stats, biased var) into scale/shift ---
    cnt = float(N * Ho * Wo)
    mean = jnp.sum(psum[:, 0, :], axis=0) / cnt
    ex2 = jnp.sum(pssq[:, 0, :], axis=0) / cnt
    var = jnp.maximum(ex2 - mean * mean, 0.0)
    scale = gamma_p / jnp.sqrt(var + eps)
    shift = beta_p - mean * scale
    scale2 = scale.reshape(1, Cout_p)
    shift2 = shift.reshape(1, Cout_p)

    # ---- kernel 2: lane-dense affine + ReLU ---------------------------------
    def bn_relu_kernel(y_ref, scale_ref, shift_ref, o_ref):
        o_ref[0] = jnp.maximum(
            y_ref[0] * scale_ref[...] + shift_ref[...], 0.0)

    out = pl.pallas_call(
        bn_relu_kernel,
        out_shape=jax.ShapeDtypeStruct((N, Ho * Wo, Cout_p), jnp.float32),
        grid_spec=pltpu.PrefetchScalarGridSpec(
            num_scalar_prefetch=0,
            grid=(N,),
            in_specs=[
                pl.BlockSpec((1, Ho * Wo, Cout_p), lambda n: (n, 0, 0)),
                pl.BlockSpec((1, Cout_p), lambda n: (0, 0)),
                pl.BlockSpec((1, Cout_p), lambda n: (0, 0)),
            ],
            out_specs=pl.BlockSpec((1, Ho * Wo, Cout_p), lambda n: (n, 0, 0)),
        ),
        compiler_params=pltpu.CompilerParams(
            dimension_semantics=("parallel",)),
    )(y, scale2, shift2)

    # lane-dense slab -> drop channel padding -> NCHW
    out = out[:, :, :Cout].reshape(N, Ho, Wo, Cout)
    return jnp.transpose(out, (0, 3, 1, 2))


def basic_conv2d_reference(x_nchw, params, padding=1, eps=1e-5):
    """Pure-JAX reference (NCHW) for correctness checking."""
    w, gamma, beta = params["w"], params["gamma"], params["beta"]
    w_oihw = jnp.transpose(w, (3, 2, 0, 1))                # (Cout, Cin, kh, kw)
    y = jax.lax.conv_general_dilated(
        x_nchw, w_oihw, window_strides=(1, 1),
        padding=((padding, padding), (padding, padding)),
        dimension_numbers=("NCHW", "OIHW", "NCHW"),
        precision=jax.lax.Precision.HIGHEST)
    mean = jnp.mean(y, axis=(0, 2, 3), keepdims=True)
    var = jnp.var(y, axis=(0, 2, 3), keepdims=True)        # biased (training BN)
    y = (y - mean) / jnp.sqrt(var + eps)
    y = y * gamma[None, :, None, None] + beta[None, :, None, None]
    return jnp.maximum(y, 0.0)


def init_params(key, ch_in, ch_out, k=3):
    k_w, k_g, k_b = jax.random.split(key, 3)
    fan_in = ch_in * k * k
    bound = 1.0 / jnp.sqrt(fan_in)
    w = jax.random.uniform(k_w, (k, k, ch_in, ch_out), jnp.float32, -bound, bound)
    gamma = 1.0 + 0.1 * jax.random.normal(k_g, (ch_out,), jnp.float32)
    beta = 0.1 * jax.random.normal(k_b, (ch_out,), jnp.float32)
    return {"w": w, "gamma": gamma, "beta": beta}


if __name__ == "__main__":
    ch_in, ch_out = 4, 8
    key = jax.random.PRNGKey(0)
    k_x, k_p = jax.random.split(key)
    x = jax.random.normal(k_x, (2, ch_in, 16, 16), jnp.float32)   # NCHW
    params = init_params(k_p, ch_in, ch_out)

    fwd = jax.jit(basic_conv2d_forward)
    out = jax.block_until_ready(fwd(x, params))

    ref = jax.block_until_ready(basic_conv2d_reference(x, params))
    assert out.shape == (2, ch_out, 16, 16), out.shape
    max_err = float(jnp.max(jnp.abs(out - ref)))
    assert jnp.allclose(out, ref, rtol=2e-3, atol=2e-3), max_err

    print("KERNEL_OK")
</pallas_src>

<mosaic_0001>
module attributes {stable_mosaic.version = 11 : i64} {
  func.func @conv_stats_kernel(%arg0: i32, %arg1: memref<1x18x18x128xf32, #tpu.memory_space<vmem>>, %arg2: memref<1152x128xf32, #tpu.memory_space<vmem>>, %arg3: memref<1x256x128xf32, #tpu.memory_space<vmem>>, %arg4: memref<1x1x128xf32, #tpu.memory_space<vmem>>, %arg5: memref<1x1x128xf32, #tpu.memory_space<vmem>>) attributes {dimension_semantics = [#tpu.dimension_semantics<parallel>], iteration_bounds = array<i64: 2>, scalar_prefetch = 0 : i64, scratch_operands = 0 : i64, tpu.core_type = #tpu.core_type<tc>, window_params = [{transform_indices = @transform_0, window_bounds = array<i64: 1, 18, 18, 128>}, {pipeline_mode = #tpu.pipeline_mode<synchronous>, transform_indices = @transform_1, window_bounds = array<i64: 1152, 128>}, {transform_indices = @transform_2, window_bounds = array<i64: 1, 256, 128>}, {transform_indices = @transform_3, window_bounds = array<i64: 1, 1, 128>}, {transform_indices = @transform_4, window_bounds = array<i64: 1, 1, 128>}]} {
    %c0 = arith.constant 0 : index
    %c0_0 = arith.constant 0 : index
    %c0_1 = arith.constant 0 : index
    %c0_2 = arith.constant 0 : index
    %0 = vector.load %arg1[%c0, %c0_0, %c0_1, %c0_2] : memref<1x18x18x128xf32, #tpu.memory_space<vmem>>, vector<1x18x18x128xf32>
    %1 = vector.shape_cast %0 : vector<1x18x18x128xf32> to vector<18x18x128xf32>
    %2 = vector.extract_strided_slice %1 {offsets = [0, 0, 0], sizes = [16, 16, 128], strides = [1, 1, 1]} : vector<18x18x128xf32> to vector<16x16x128xf32>
    %3 = vector.shape_cast %2 : vector<16x16x128xf32> to vector<256x128xf32>
    %4 = vector.extract_strided_slice %1 {offsets = [0, 1, 0], sizes = [16, 16, 128], strides = [1, 1, 1]} : vector<18x18x128xf32> to vector<16x16x128xf32>
    %5 = vector.shape_cast %4 : vector<16x16x128xf32> to vector<256x128xf32>
    %6 = vector.extract_strided_slice %1 {offsets = [0, 2, 0], sizes = [16, 16, 128], strides = [1, 1, 1]} : vector<18x18x128xf32> to vector<16x16x128xf32>
    %7 = vector.shape_cast %6 : vector<16x16x128xf32> to vector<256x128xf32>
    %8 = vector.extract_strided_slice %1 {offsets = [1, 0, 0], sizes = [16, 16, 128], strides = [1, 1, 1]} : vector<18x18x128xf32> to vector<16x16x128xf32>
    %9 = vector.shape_cast %8 : vector<16x16x128xf32> to vector<256x128xf32>
    %10 = vector.extract_strided_slice %1 {offsets = [1, 1, 0], sizes = [16, 16, 128], strides = [1, 1, 1]} : vector<18x18x128xf32> to vector<16x16x128xf32>
    %11 = vector.shape_cast %10 : vector<16x16x128xf32> to vector<256x128xf32>
    %12 = vector.extract_strided_slice %1 {offsets = [1, 2, 0], sizes = [16, 16, 128], strides = [1, 1, 1]} : vector<18x18x128xf32> to vector<16x16x128xf32>
    %13 = vector.shape_cast %12 : vector<16x16x128xf32> to vector<256x128xf32>
    %14 = vector.extract_strided_slice %1 {offsets = [2, 0, 0], sizes = [16, 16, 128], strides = [1, 1, 1]} : vector<18x18x128xf32> to vector<16x16x128xf32>
    %15 = vector.shape_cast %14 : vector<16x16x128xf32> to vector<256x128xf32>
    %16 = vector.extract_strided_slice %1 {offsets = [2, 1, 0], sizes = [16, 16, 128], strides = [1, 1, 1]} : vector<18x18x128xf32> to vector<16x16x128xf32>
    %17 = vector.shape_cast %16 : vector<16x16x128xf32> to vector<256x128xf32>
    %18 = vector.extract_strided_slice %1 {offsets = [2, 2, 0], sizes = [16, 16, 128], strides = [1, 1, 1]} : vector<18x18x128xf32> to vector<16x16x128xf32>
    %19 = vector.shape_cast %18 : vector<16x16x128xf32> to vector<256x128xf32>
    %20 = tpu.concatenate %3, %5, %7, %9, %11, %13, %15, %17, %19 in 1 : vector<256x128xf32>, vector<256x128xf32>, vector<256x128xf32>, vector<256x128xf32>, vector<256x128xf32>, vector<256x128xf32>, vector<256x128xf32>, vector<256x128xf32>, vector<256x128xf32> -> vector<256x1152xf32>
    %c0_3 = arith.constant 0 : index
    %c0_4 = arith.constant 0 : index
    %21 = vector.load %arg2[%c0_3, %c0_4] : memref<1152x128xf32, #tpu.memory_space<vmem>>, vector<1152x128xf32>
    %cst = arith.constant dense<0.000000e+00> : vector<256x128xf32>
    %22 = tpu.matmul %20, %21, %cst {dimension_numbers = #tpu.dot_dimension_numbers<[1], [0], [0], [1], [0, 0, 1, 1], [], []>} : vector<256x1152xf32>, vector<1152x128xf32>, vector<256x128xf32> -> vector<256x128xf32>
    %c0_5 = arith.constant 0 : index
    %c0_6 = arith.constant 0 : index
    %c0_7 = arith.constant 0 : index
    %23 = vector.load %arg3[%c0_5, %c0_6, %c0_7] : memref<1x256x128xf32, #tpu.memory_space<vmem>>, vector<1x256x128xf32>
    %24 = vector.shape_cast %23 : vector<1x256x128xf32> to vector<256x128xf32>
    %25 = vector.shape_cast %22 : vector<256x128xf32> to vector<1x256x128xf32>
    tpu.vector_store %arg3[%c0_5, %c0_6, %c0_7], %25 {strides = array<i32>} : memref<1x256x128xf32, #tpu.memory_space<vmem>>, vector<1x256x128xf32>,
    %cst_8 = arith.constant dense<0.000000e+00> : vector<128xf32>
    %26 = vector.multi_reduction <add>, %22, %cst_8 [0] : vector<256x128xf32> to vector<128xf32>
    %27 = vector.shape_cast %26 : vector<128xf32> to vector<1x128xf32>
    %c0_9 = arith.constant 0 : index
    %c0_10 = arith.constant 0 : index
    %c0_11 = arith.constant 0 : index
    %28 = vector.load %arg4[%c0_9, %c0_10, %c0_11] : memref<1x1x128xf32, #tpu.memory_space<vmem>>, vector<1x1x128xf32>
    %29 = vector.shape_cast %28 : vector<1x1x128xf32> to vector<1x128xf32>
    %30 = vector.shape_cast %27 : vector<1x128xf32> to vector<1x1x128xf32>
    tpu.vector_store %arg4[%c0_9, %c0_10, %c0_11], %30 {strides = array<i32>} : memref<1x1x128xf32, #tpu.memory_space<vmem>>, vector<1x1x128xf32>,
    %31 = arith.mulf %22, %22 : vector<256x128xf32>
    %cst_12 = arith.constant dense<0.000000e+00> : vector<128xf32>
    %32 = vector.multi_reduction <add>, %31, %cst_12 [0] : vector<256x128xf32> to vector<128xf32>
    %33 = vector.shape_cast %32 : vector<128xf32> to vector<1x128xf32>
    %c0_13 = arith.constant 0 : index
    %c0_14 = arith.constant 0 : index
    %c0_15 = arith.constant 0 : index
    %34 = vector.load %arg5[%c0_13, %c0_14, %c0_15] : memref<1x1x128xf32, #tpu.memory_space<vmem>>, vector<1x1x128xf32>
    %35 = vector.shape_cast %34 : vector<1x1x128xf32> to vector<1x128xf32>
    %36 = vector.shape_cast %33 : vector<1x128xf32> to vector<1x1x128xf32>
    tpu.vector_store %arg5[%c0_13, %c0_14, %c0_15], %36 {strides = array<i32>} : memref<1x1x128xf32, #tpu.memory_space<vmem>>, vector<1x1x128xf32>,
    return
  }
  func.func @transform_0(%arg0: i32) -> (i32, i32, i32, i32) {
    %c0_i32 = arith.constant 0 : i32
    %c0_i32_0 = arith.constant 0 : i32
    %c0_i32_1 = arith.constant 0 : i32
    %c0_i32_2 = arith.constant 0 : i32
    return %arg0, %c0_i32, %c0_i32_0, %c0_i32_1 : i32, i32, i32, i32
  }
  func.func @transform_1(%arg0: i32) -> (i32, i32) {
    %c0_i32 = arith.constant 0 : i32
    %c0_i32_0 = arith.constant 0 : i32
    %c0_i32_1 = arith.constant 0 : i32
    return %c0_i32, %c0_i32_0 : i32, i32
  }
  func.func @transform_2(%arg0: i32) -> (i32, i32, i32) {
    %c0_i32 = arith.constant 0 : i32
    %c0_i32_0 = arith.constant 0 : i32
    %c0_i32_1 = arith.constant 0 : i32
    return %arg0, %c0_i32, %c0_i32_0 : i32, i32, i32
  }
  func.func @transform_3(%arg0: i32) -> (i32, i32, i32) {
    %c0_i32 = arith.constant 0 : i32
    %c0_i32_0 = arith.constant 0 : i32
    %c0_i32_1 = arith.constant 0 : i32
    return %arg0, %c0_i32, %c0_i32_0 : i32, i32, i32
  }
  func.func @transform_4(%arg0: i32) -> (i32, i32, i32) {
    %c0_i32 = arith.constant 0 : i32
    %c0_i32_0 = arith.constant 0 : i32
    %c0_i32_1 = arith.constant 0 : i32
    return %arg0, %c0_i32, %c0_i32_0 : i32, i32, i32
  }
}

module attributes {stable_mosaic.version = 11 : i64} {
  func.func @bn_relu_kernel(%arg0: i32, %arg1: memref<1x256x128xf32, #tpu.memory_space<vmem>>, %arg2: memref<1x128xf32, #tpu.memory_space<vmem>>, %arg3: memref<1x128xf32, #tpu.memory_space<vmem>>, %arg4: memref<1x256x128xf32, #tpu.memory_space<vmem>>) attributes {dimension_semantics = [#tpu.dimension_semantics<parallel>], iteration_bounds = array<i64: 2>, scalar_prefetch = 0 : i64, scratch_operands = 0 : i64, tpu.core_type = #tpu.core_type<tc>, window_params = [{transform_indices = @transform_0, window_bounds = array<i64: 1, 256, 128>}, {pipeline_mode = #tpu.pipeline_mode<synchronous>, transform_indices = @transform_1, window_bounds = array<i64: 1, 128>}, {pipeline_mode = #tpu.pipeline_mode<synchronous>, transform_indices = @transform_2, window_bounds = array<i64: 1, 128>}, {transform_indices = @transform_3, window_bounds = array<i64: 1, 256, 128>}]} {
    %c0 = arith.constant 0 : index
    %c0_0 = arith.constant 0 : index
    %c0_1 = arith.constant 0 : index
    %0 = vector.load %arg1[%c0, %c0_0, %c0_1] : memref<1x256x128xf32, #tpu.memory_space<vmem>>, vector<1x256x128xf32>
    %1 = vector.shape_cast %0 : vector<1x256x128xf32> to vector<256x128xf32>
    %c0_2 = arith.constant 0 : index
    %c0_3 = arith.constant 0 : index
    %2 = vector.load %arg2[%c0_2, %c0_3] : memref<1x128xf32, #tpu.memory_space<vmem>>, vector<1x128xf32>
    %3 = vector.broadcast %2 : vector<1x128xf32> to vector<256x128xf32>
    %4 = arith.mulf %1, %3 : vector<256x128xf32>
    %c0_4 = arith.constant 0 : index
    %c0_5 = arith.constant 0 : index
    %5 = vector.load %arg3[%c0_4, %c0_5] : memref<1x128xf32, #tpu.memory_space<vmem>>, vector<1x128xf32>
    %6 = vector.broadcast %5 : vector<1x128xf32> to vector<256x128xf32>
    %7 = arith.addf %4, %6 : vector<256x128xf32>
    %cst = arith.constant 0.000000e+00 : f32
    %8 = vector.broadcast %cst : f32 to vector<256x128xf32>
    %9 = arith.maximumf %7, %8 : vector<256x128xf32>
    %c0_6 = arith.constant 0 : index
    %c0_7 = arith.constant 0 : index
    %c0_8 = arith.constant 0 : index
    %10 = vector.load %arg4[%c0_6, %c0_7, %c0_8] : memref<1x256x128xf32, #tpu.memory_space<vmem>>, vector<1x256x128xf32>
    %11 = vector.shape_cast %10 : vector<1x256x128xf32> to vector<256x128xf32>
    %12 = vector.shape_cast %9 : vector<256x128xf32> to vector<1x256x128xf32>
    tpu.vector_store %arg4[%c0_6, %c0_7, %c0_8], %12 {strides = array<i32>} : memref<1x256x128xf32, #tpu.memory_space<vmem>>, vector<1x256x128xf32>,
    return
  }
  func.func @transform_0(%arg0: i32) -> (i32, i32, i32) {
    %c0_i32 = arith.constant 0 : i32
    %c0_i32_0 = arith.constant 0 : i32
    %c0_i32_1 = arith.constant 0 : i32
    return %arg0, %c0_i32, %c0_i32_0 : i32, i32, i32
  }
  func.func @transform_1(%arg0: i32) -> (i32, i32) {
    %c0_i32 = arith.constant 0 : i32
    %c0_i32_0 = arith.constant 0 : i32
    %c0_i32_1 = arith.constant 0 : i32
    return %c0_i32, %c0_i32_0 : i32, i32
  }
  func.func @transform_2(%arg0: i32) -> (i32, i32) {
    %c0_i32 = arith.constant 0 : i32
    %c0_i32_0 = arith.constant 0 : i32
    %c0_i32_1 = arith.constant 0 : i32
    return %c0_i32, %c0_i32_0 : i32, i32
  }
  func.func @transform_3(%arg0: i32) -> (i32, i32, i32) {
    %c0_i32 = arith.constant 0 : i32
    %c0_i32_0 = arith.constant 0 : i32
    %c0_i32_1 = arith.constant 0 : i32
    return %arg0, %c0_i32, %c0_i32_0 : i32, i32, i32
  }
}

</mosaic_0001>

<llo_original>
// kernel: basic_conv2d_forward.3
$region0: #{basic_conv2d_forward.3}
  #allocation0 [shape = 'u32[]', space=smem, size = 0x4, offset = 0x4, fixed_abs, tag = 'smem constant byte address 0x4 - core index']
  #allocation1 [shape = 'u32[72,128]{1,0:T(1,128)}', space=vmem, size = 0x9000, scoped, tag = 'internal scratch']
  %s0 = inlined_call_operand.vmem [shape: f32[2,256,128], index: 0, kind: input, shape index: {}]
  %s1 = inlined_call_operand.vmem [shape: f32[1,128], index: 1, kind: input, shape index: {}]
  %s2 = inlined_call_operand.vmem [shape: f32[1,128], index: 2, kind: input, shape index: {}]
  %s3 = inlined_call_operand.vmem [shape: f32[2,256,128], index: 3, kind: output, shape index: {}]
  %s4 = sld [smem:[#allocation0]]
  $region45: #{basic_conv2d_forward.3} parent=0
    _
  %s6 = ssub.s32 1, %s4
  %s7 = scalar_select 0, %s6, %s4
  loop: start=0, step=1, limit=4
  $region2: #{basic_conv2d_forward.3} parent=0 // loop_pre_header
    _
  $region3: #{basic_conv2d_forward.3} parent=0 // loop_header
    %s9 = sphi 0, %s13
    %p10 = scmp.ge.s32.totalorder %s9, 4
    %s19 = sphi 0, %s21
    %s22 = sphi 0, %s19
    %s23 = sphi 0, %s22
    %s39 = sphi 0, %s23
    %s43 = sphi 0, %s43
    %s45 = sphi 0, %s43
    %s46 = sphi 0, %s45
    %s60 = sphi 0, %s46
    %s64 = sphi 0, %s64
    %s66 = sphi 0, %s64
    %s67 = sphi 0, %s66
    %s81 = sphi 0, %s67
    %s87 = sphi 0, %s89
    %s90 = sphi 0, %s87
    %s91 = sphi 0, %s90
    %s107 = sphi 0, %s91
  $region4: #{basic_conv2d_forward.3} parent=0 // loop_header_branch
    %12 = sbr.rel (%p10) target = $region8
  $region5: #{basic_conv2d_forward.3} parent=0 // loop_body
    %s14 = ssub.s32 %s9, 1
    %s15 = ssub.s32 %s9, 2
    %s16 = sadd.s32 %s9, 1
    %s17 = ssub.s32 %s9, %s16
    %p18 = scmp.eq.s32.totalorder %s17, 0
    %s20 = sadd.s32 %s19, 1
    %s21 = scalar_select %p18, %s19, %s20
    %p24 = pneg %p18
    %p25 = scmp.eq.s32.totalorder %s9, 1
    %p26 = por %p24, %p25
    %p27 = scmp.ne.s32.totalorder %s19, %s22
    %p28 = scmp.eq.s32.totalorder %s9, 0
    %p29 = por %p27, %p28
    %p30 = scmp.ne.s32.totalorder %s19, %s22
    %p31 = scmp.eq.s32.totalorder %s14, 1
    %p32 = por %p30, %p31
    %p33 = scmp.ne.s32.totalorder %s22, %s23
    %p34 = scmp.eq.s32.totalorder %s14, 0
    %p35 = por %p33, %p34
    %p36 = scmp.ne.s32.totalorder %s22, %s23
    %p37 = scmp.eq.s32.totalorder %s15, 1
    %p38 = por %p36, %p37
    %p40 = scmp.ne.s32.totalorder %s23, %s39
    %p41 = scmp.eq.s32.totalorder %s15, 0
    %p42 = por %p40, %p41
    %s44 = sadd.s32 %s43, 1
    %p47 = scmp.eq.s32.totalorder %s9, 1
    %p48 = scmp.ne.s32.totalorder %s43, %s45
    %p49 = scmp.eq.s32.totalorder %s9, 0
    %p50 = por %p48, %p49
    %p51 = scmp.ne.s32.totalorder %s43, %s45
    %p52 = scmp.eq.s32.totalorder %s14, 1
    %p53 = por %p51, %p52
    %p54 = scmp.ne.s32.totalorder %s45, %s46
    %p55 = scmp.eq.s32.totalorder %s14, 0
    %p56 = por %p54, %p55
    %p57 = scmp.ne.s32.totalorder %s45, %s46
    %p58 = scmp.eq.s32.totalorder %s15, 1
    %p59 = por %p57, %p58
    %p61 = scmp.ne.s32.totalorder %s46, %s60
    %p62 = scmp.eq.s32.totalorder %s15, 0
    %p63 = por %p61, %p62
    %s65 = sadd.s32 %s64, 1
    %p68 = scmp.eq.s32.totalorder %s9, 1
    %p69 = scmp.ne.s32.totalorder %s64, %s66
    %p70 = scmp.eq.s32.totalorder %s9, 0
    %p71 = por %p69, %p70
    %p72 = scmp.ne.s32.totalorder %s64, %s66
    %p73 = scmp.eq.s32.totalorder %s14, 1
    %p74 = por %p72, %p73
    %p75 = scmp.ne.s32.totalorder %s66, %s67
    %p76 = scmp.eq.s32.totalorder %s14, 0
    %p77 = por %p75, %p76
    %p78 = scmp.ne.s32.totalorder %s66, %s67
    %p79 = scmp.eq.s32.totalorder %s15, 1
    %p80 = por %p78, %p79
    %p82 = scmp.ne.s32.totalorder %s67, %s81
    %p83 = scmp.eq.s32.totalorder %s15, 0
    %p84 = por %p82, %p83
    %s85 = ssub.s32 %s9, %s16
    %p86 = scmp.eq.s32.totalorder %s85, 0
    %s88 = sadd.s32 %s87, 1
    %s89 = scalar_select %p86, %s87, %s88
    %p92 = pneg %p86
    %p93 = scmp.eq.s32.totalorder %s9, 1
    %p94 = por %p92, %p93
    %p95 = scmp.ne.s32.totalorder %s87, %s90
    %p96 = scmp.eq.s32.totalorder %s9, 0
    %p97 = por %p95, %p96
    %p98 = scmp.ne.s32.totalorder %s87, %s90
    %p99 = scmp.eq.s32.totalorder %s14, 1
    %p100 = por %p98, %p99
    %p101 = scmp.ne.s32.totalorder %s90, %s91
    %p102 = scmp.eq.s32.totalorder %s14, 0
    %p103 = por %p101, %p102
    %p104 = scmp.ne.s32.totalorder %s90, %s91
    %p105 = scmp.eq.s32.totalorder %s15, 1
    %p106 = por %p104, %p105
    %p108 = scmp.ne.s32.totalorder %s91, %s107
    %p109 = scmp.eq.s32.totalorder %s15, 0
    %p110 = por %p108, %p109
    %p111 = scmp.le.s32.totalorder 1, %s9
    %p112 = scmp.lt.s32.totalorder %s9, 3
    %p113 = pnand %p111, %p112
    %p114 = pneg %p113
    // Predicated region
    $region9: #{basic_conv2d_forward.3} parent=5 // pred_check
      _
    $region10: #{basic_conv2d_forward.3} parent=5 // pred_check_branch
      %116 = sbr.rel (%p113) target = $region12
    $region11: #{basic_conv2d_forward.3} parent=5 // pred_region
      %s117 = ssub.s32 %s9, 1
      // Predicated region
      $region13: #{basic_conv2d_forward.3} parent=11 // pred_check
        %p118 = pneg %p56
      $region14: #{basic_conv2d_forward.3} parent=11 // pred_check_branch
        %120 = sbr.rel (%p118) target = $region16
      $region15: #{basic_conv2d_forward.3} parent=11 // pred_region
        _
      $region16: #{basic_conv2d_forward.3} parent=11 // pred_fallthru
        _
      // Predicated region
      $region17: #{basic_conv2d_forward.3} parent=11 // pred_check
        %p121 = pneg %p77
      $region18: #{basic_conv2d_forward.3} parent=11 // pred_check_branch
        %123 = sbr.rel (%p121) target = $region20
      $region19: #{basic_conv2d_forward.3} parent=11 // pred_region
        _
      $region20: #{basic_conv2d_forward.3} parent=11 // pred_fallthru
        _
    $region12: #{basic_conv2d_forward.3} parent=5 // pred_fallthru
      _
    %p124 = scmp.lt.s32.totalorder %s9, 2
    // Predicated region
    $region21: #{basic_conv2d_forward.3} parent=5 // pred_check
      %p125 = pneg %p124
    $region22: #{basic_conv2d_forward.3} parent=5 // pred_check_branch
      %127 = sbr.rel (%p125) target = $region24
    $region23: #{basic_conv2d_forward.3} parent=5 // pred_region
      // Predicated region
      $region25: #{basic_conv2d_forward.3} parent=23 // pred_check
        %p128 = pneg %p29
      $region26: #{basic_conv2d_forward.3} parent=23 // pred_check_branch
        %130 = sbr.rel (%p128) target = $region28
      $region27: #{basic_conv2d_forward.3} parent=23 // pred_region
        %p131 = scmp.lt.s32.totalorder %s9, 1
        %s132 = scalar_select %p131, %s9, 1
        %s133 = smul.addr %s132, 32
        %s134 = smul.addr %s133, 8
        %s135 = scalar_lea.vmem %s0, %s134
      $region28: #{basic_conv2d_forward.3} parent=23 // pred_fallthru
        _
    $region24: #{basic_conv2d_forward.3} parent=5 // pred_fallthru
      _
    %p136 = scmp.le.s32.totalorder 1, %s9
    %p137 = scmp.lt.s32.totalorder %s9, 3
    %p138 = pnand %p136, %p137
    %p139 = pneg %p138
    // Predicated region
    $region29: #{basic_conv2d_forward.3} parent=5 // pred_check
      _
    $region30: #{basic_conv2d_forward.3} parent=5 // pred_check_branch
      %141 = sbr.rel (%p138) target = $region32
    $region31: #{basic_conv2d_forward.3} parent=5 // pred_region
      %s142 = ssub.s32 %s9, 1
      %p143 = scmp.lt.s32.totalorder %s14, 1
      %s144 = scalar_select %p143, %s14, 1
      %s145 = smul.addr %s144, 32
      %s146 = smul.addr %s145, 8
      %s147 = scalar_lea.vmem %s0, %s146
      %p148 = pneg %p35
      %p149 = pneg %p32
      %p150 = pneg %p56
      %p151 = pneg %p53
      %p152 = pneg %p77
      %p153 = pneg %p74
      %p154 = pneg %p103
      %p155 = pneg %p100
      %p156 = scmp.lt.s32.totalorder %s14, 1
      %s157 = scalar_select %p156, %s14, 1
      %s158 = smul.addr %s157, 32
      %s159 = smul.addr %s158, 8
      %s160 = scalar_lea.vmem %s3, %s159
      %p161 = scmp.lt.s32.totalorder %s14, 1
      %s162 = scalar_select %p161, %s14, 1
      %s163 = smul.addr %s162, 32
      %s164 = smul.addr %s163, 8
      %s165 = scalar_lea.vmem %s0, %s164
      %p166 = scmp.lt.s32.totalorder %s14, 1
      %s167 = scalar_select %p166, %s14, 1
      %s168 = smul.addr %s167, 32
      %s169 = smul.addr %s168, 8
      %s170 = scalar_lea.vmem %s3, %s169
      %v171 = vld [vmem:[%s165] sm:$0xff]
      %v172 = vld [vmem:[%s165 + $0x8] sm:$0xff]
      %v173 = vld [vmem:[%s165 + $0x10] sm:$0xff]
      %v174 = vld [vmem:[%s165 + $0x18] sm:$0xff]
      %v175 = vld [vmem:[%s165 + $0x20] sm:$0xff]
      %v176 = vld [vmem:[%s165 + $0x28] sm:$0xff]
      %v177 = vld [vmem:[%s165 + $0x30] sm:$0xff]
      %v178 = vld [vmem:[%s165 + $0x38] sm:$0xff]
      %v179 = vld [vmem:[%s165 + $0x40] sm:$0xff]
      %v180 = vld [vmem:[%s165 + $0x48] sm:$0xff]
      %v181 = vld [vmem:[%s165 + $0x50] sm:$0xff]
      %v182 = vld [vmem:[%s165 + $0x58] sm:$0xff]
      %v183 = vld [vmem:[%s165 + $0x60] sm:$0xff]
      %v184 = vld [vmem:[%s165 + $0x68] sm:$0xff]
      %v185 = vld [vmem:[%s165 + $0x70] sm:$0xff]
      %v186 = vld [vmem:[%s165 + $0x78] sm:$0xff]
      %v187 = vld [vmem:[%s165 + $0x80] sm:$0xff]
      %v188 = vld [vmem:[%s165 + $0x88] sm:$0xff]
      %v189 = vld [vmem:[%s165 + $0x90] sm:$0xff]
      %v190 = vld [vmem:[%s165 + $0x98] sm:$0xff]
      %v191 = vld [vmem:[%s165 + $0xa0] sm:$0xff]
      %v192 = vld [vmem:[%s165 + $0xa8] sm:$0xff]
      %v193 = vld [vmem:[%s165 + $0xb0] sm:$0xff]
      %v194 = vld [vmem:[%s165 + $0xb8] sm:$0xff]
      %v195 = vld [vmem:[%s165 + $0xc0] sm:$0xff]
      %v196 = vld [vmem:[%s165 + $0xc8] sm:$0xff]
      %v197 = vld [vmem:[%s165 + $0xd0] sm:$0xff]
      %v198 = vld [vmem:[%s165 + $0xd8] sm:$0xff]
      %v199 = vld [vmem:[%s165 + $0xe0] sm:$0xff]
      %v200 = vld [vmem:[%s165 + $0xe8] sm:$0xff]
      %v201 = vld [vmem:[%s165 + $0xf0] sm:$0xff]
      %v202 = vld [vmem:[%s165 + $0xf8] sm:$0xff]
      %v203 = vld [vmem:[%s1] sm:$0x1]
      %v205 = vperm.slane %v203, 0
      %v207 = vmul.f32 %v171, %v205
      %v208 = vmul.f32 %v172, %v205
      %v209 = vmul.f32 %v173, %v205
      %v210 = vmul.f32 %v174, %v205
      %v211 = vmul.f32 %v175, %v205
      %v212 = vmul.f32 %v176, %v205
      %v213 = vmul.f32 %v177, %v205
      %v214 = vmul.f32 %v178, %v205
      %v215 = vmul.f32 %v179, %v205
      %v216 = vmul.f32 %v180, %v205
      %v217 = vmul.f32 %v181, %v205
      %v218 = vmul.f32 %v182, %v205
      %v219 = vmul.f32 %v183, %v205
      %v220 = vmul.f32 %v184, %v205
      %v221 = vmul.f32 %v185, %v205
      %v222 = vmul.f32 %v186, %v205
      %v223 = vmul.f32 %v187, %v205
      %v224 = vmul.f32 %v188, %v205
      %v225 = vmul.f32 %v189, %v205
      %v226 = vmul.f32 %v190, %v205
      %v227 = vmul.f32 %v191, %v205
      %v228 = vmul.f32 %v192, %v205
      %v229 = vmul.f32 %v193, %v205
      %v230 = vmul.f32 %v194, %v205
      %v231 = vmul.f32 %v195, %v205
      %v232 = vmul.f32 %v196, %v205
      %v233 = vmul.f32 %v197, %v205
      %v234 = vmul.f32 %v198, %v205
      %v235 = vmul.f32 %v199, %v205
      %v236 = vmul.f32 %v200, %v205
      %v237 = vmul.f32 %v201, %v205
      %v238 = vmul.f32 %v202, %v205
      %v239 = vld [vmem:[%s2] sm:$0x1]
      %v241 = vperm.slane %v239, 0
      %v243 = vadd.f32 %v207, %v241
      %v244 = vadd.f32 %v208, %v241
      %v245 = vadd.f32 %v209, %v241
      %v246 = vadd.f32 %v210, %v241
      %v247 = vadd.f32 %v211, %v241
      %v248 = vadd.f32 %v212, %v241
      %v249 = vadd.f32 %v213, %v241
      %v250 = vadd.f32 %v214, %v241
      %v251 = vadd.f32 %v215, %v241
      %v252 = vadd.f32 %v216, %v241
      %v253 = vadd.f32 %v217, %v241
      %v254 = vadd.f32 %v218, %v241
      %v255 = vadd.f32 %v219, %v241
      %v256 = vadd.f32 %v220, %v241
      %v257 = vadd.f32 %v221, %v241
      %v258 = vadd.f32 %v222, %v241
      %v259 = vadd.f32 %v223, %v241
      %v260 = vadd.f32 %v224, %v241
      %v261 = vadd.f32 %v225, %v241
      %v262 = vadd.f32 %v226, %v241
      %v263 = vadd.f32 %v227, %v241
      %v264 = vadd.f32 %v228, %v241
      %v265 = vadd.f32 %v229, %v241
      %v266 = vadd.f32 %v230, %v241
      %v267 = vadd.f32 %v231, %v241
      %v268 = vadd.f32 %v232, %v241
      %v269 = vadd.f32 %v233, %v241
      %v270 = vadd.f32 %v234, %v241
      %v271 = vadd.f32 %v235, %v241
      %v272 = vadd.f32 %v236, %v241
      %v273 = vadd.f32 %v237, %v241
      %v274 = vadd.f32 %v238, %v241
      %v275 = vmax.f32 %v243, 0.0
      %v276 = vmax.f32 %v244, 0.0
      %v277 = vmax.f32 %v245, 0.0
      %v278 = vmax.f32 %v246, 0.0
      %v279 = vmax.f32 %v247, 0.0
      %v280 = vmax.f32 %v248, 0.0
      %v281 = vmax.f32 %v249, 0.0
      %v282 = vmax.f32 %v250, 0.0
      %v283 = vmax.f32 %v251, 0.0
      %v284 = vmax.f32 %v252, 0.0
      %v285 = vmax.f32 %v253, 0.0
      %v286 = vmax.f32 %v254, 0.0
      %v287 = vmax.f32 %v255, 0.0
      %v288 = vmax.f32 %v256, 0.0
      %v289 = vmax.f32 %v257, 0.0
      %v290 = vmax.f32 %v258, 0.0
      %v291 = vmax.f32 %v259, 0.0
      %v292 = vmax.f32 %v260, 0.0
      %v293 = vmax.f32 %v261, 0.0
      %v294 = vmax.f32 %v262, 0.0
      %v295 = vmax.f32 %v263, 0.0
      %v296 = vmax.f32 %v264, 0.0
      %v297 = vmax.f32 %v265, 0.0
      %v298 = vmax.f32 %v266, 0.0
      %v299 = vmax.f32 %v267, 0.0
      %v300 = vmax.f32 %v268, 0.0
      %v301 = vmax.f32 %v269, 0.0
      %v302 = vmax.f32 %v270, 0.0
      %v303 = vmax.f32 %v271, 0.0
      %v304 = vmax.f32 %v272, 0.0
      %v305 = vmax.f32 %v273, 0.0
      %v306 = vmax.f32 %v274, 0.0
      %307 = vst [vmem:[%s170] sm:$0xff] %v275
      %308 = vst [vmem:[%s170 + $0x8] sm:$0xff] %v276
      %309 = vst [vmem:[%s170 + $0x10] sm:$0xff] %v277
      %310 = vst [vmem:[%s170 + $0x18] sm:$0xff] %v278
      %311 = vst [vmem:[%s170 + $0x20] sm:$0xff] %v279
      %312 = vst [vmem:[%s170 + $0x28] sm:$0xff] %v280
      %313 = vst [vmem:[%s170 + $0x30] sm:$0xff] %v281
      %314 = vst [vmem:[%s170 + $0x38] sm:$0xff] %v282
      %315 = vst [vmem:[%s170 + $0x40] sm:$0xff] %v283
      %316 = vst [vmem:[%s170 + $0x48] sm:$0xff] %v284
      %317 = vst [vmem:[%s170 + $0x50] sm:$0xff] %v285
      %318 = vst [vmem:[%s170 + $0x58] sm:$0xff] %v286
      %319 = vst [vmem:[%s170 + $0x60] sm:$0xff] %v287
      %320 = vst [vmem:[%s170 + $0x68] sm:$0xff] %v288
      %321 = vst [vmem:[%s170 + $0x70] sm:$0xff] %v289
      %322 = vst [vmem:[%s170 + $0x78] sm:$0xff] %v290
      %323 = vst [vmem:[%s170 + $0x80] sm:$0xff] %v291
      %324 = vst [vmem:[%s170 + $0x88] sm:$0xff] %v292
      %325 = vst [vmem:[%s170 + $0x90] sm:$0xff] %v293
      %326 = vst [vmem:[%s170 + $0x98] sm:$0xff] %v294
      %327 = vst [vmem:[%s170 + $0xa0] sm:$0xff] %v295
      %328 = vst [vmem:[%s170 + $0xa8] sm:$0xff] %v296
      %329 = vst [vmem:[%s170 + $0xb0] sm:$0xff] %v297
      %330 = vst [vmem:[%s170 + $0xb8] sm:$0xff] %v298
      %331 = vst [vmem:[%s170 + $0xc0] sm:$0xff] %v299
      %332 = vst [vmem:[%s170 + $0xc8] sm:$0xff] %v300
      %333 = vst [vmem:[%s170 + $0xd0] sm:$0xff] %v301
      %334 = vst [vmem:[%s170 + $0xd8] sm:$0xff] %v302
      %335 = vst [vmem:[%s170 + $0xe0] sm:$0xff] %v303
      %336 = vst [vmem:[%s170 + $0xe8] sm:$0xff] %v304
      %337 = vst [vmem:[%s170 + $0xf0] sm:$0xff] %v305
      %338 = vst [vmem:[%s170 + $0xf8] sm:$0xff] %v306
      %p339 = scmp.lt.s32.totalorder %s14, 1
      %s340 = scalar_select %p339, %s14, 1
      %s341 = smul.addr %s340, 32
      %s342 = smul.addr %s341, 8
      %s343 = scalar_lea.vmem %s3, %s342
      // Predicated region
      $region33: #{basic_conv2d_forward.3} parent=31 // pred_check
        %p344 = pneg %p100
      $region34: #{basic_conv2d_forward.3} parent=31 // pred_check_branch
        %346 = sbr.rel (%p344) target = $region36
      $region35: #{basic_conv2d_forward.3} parent=31 // pred_region
        _
      $region36: #{basic_conv2d_forward.3} parent=31 // pred_fallthru
        _
    $region32: #{basic_conv2d_forward.3} parent=5 // pred_fallthru
      _
    %p347 = scmp.le.s32.totalorder 2, %s9
    // Predicated region
    $region37: #{basic_conv2d_forward.3} parent=5 // pred_check
      %p348 = pneg %p347
    $region38: #{basic_conv2d_forward.3} parent=5 // pred_check_branch
      %350 = sbr.rel (%p348) target = $region40
    $region39: #{basic_conv2d_forward.3} parent=5 // pred_region
      %s351 = ssub.s32 %s9, 2
      // Predicated region
      $region41: #{basic_conv2d_forward.3} parent=39 // pred_check
        %p352 = pneg %p106
      $region42: #{basic_conv2d_forward.3} parent=39 // pred_check_branch
        %354 = sbr.rel (%p352) target = $region44
      $region43: #{basic_conv2d_forward.3} parent=39 // pred_region
        %p355 = scmp.lt.s32.totalorder %s15, 1
        %s356 = scalar_select %p355, %s15, 1
        %s357 = smul.addr %s356, 32
        %s358 = smul.addr %s357, 8
        %s359 = scalar_lea.vmem %s3, %s358
      $region44: #{basic_conv2d_forward.3} parent=39 // pred_fallthru
        _
    $region40: #{basic_conv2d_forward.3} parent=5 // pred_fallthru
      _
  $region6: #{basic_conv2d_forward.3} parent=0 // loop_footer
    %s13 = sadd.s32 1, %s9
  $region7: #{basic_conv2d_forward.3} parent=0 // loop_footer_branch
    %8 = sbr.rel target = $region3
  $region8: #{basic_conv2d_forward.3} parent=0 // loop_exit
    _

// kernel: basic_conv2d_forward.2
$region0: #{basic_conv2d_forward.2}
  #allocation0 [shape = 'u32[]', space=smem, size = 0x4, offset = 0x4, fixed_abs, tag = 'smem constant byte address 0x4 - core index']
  #allocation1 [shape = 'u32[72,128]{1,0:T(1,128)}', space=vmem, size = 0x9000, scoped, tag = 'internal scratch']
  %s0 = inlined_call_operand.vmem [shape: f32[2,18,18,128], index: 0, kind: input, shape index: {}]
  %s1 = inlined_call_operand.vmem [shape: f32[1152,128], index: 1, kind: input, shape index: {}]
  %s2 = inlined_call_operand.vmem [shape: f32[2,256,128], index: 2, kind: output, shape index: {0}]
  %s3 = inlined_call_operand.vmem [shape: f32[2,1,128], index: 3, kind: output, shape index: {1}]
  %s4 = inlined_call_operand.vmem [shape: f32[2,1,128], index: 4, kind: output, shape index: {2}]
  %5 = xla_tuple %s2, %s3, %s4
  %s6 = sld [smem:[#allocation0]]
  $region57: #{basic_conv2d_forward.2} parent=0
    _
  %s8 = ssub.s32 1, %s6
  %s9 = scalar_select 0, %s8, %s6
  loop: start=0, step=1, limit=4
  $region2: #{basic_conv2d_forward.2} parent=0 // loop_pre_header
    _
  $region3: #{basic_conv2d_forward.2} parent=0 // loop_header
    %s11 = sphi 0, %s15
    %p12 = scmp.ge.s32.totalorder %s11, 4
    %s21 = sphi 0, %s23
    %s24 = sphi 0, %s21
    %s25 = sphi 0, %s24
    %s41 = sphi 0, %s25
    %s45 = sphi 0, %s45
    %s47 = sphi 0, %s45
    %s48 = sphi 0, %s47
    %s62 = sphi 0, %s48
    %s68 = sphi 0, %s70
    %s71 = sphi 0, %s68
    %s72 = sphi 0, %s71
    %s88 = sphi 0, %s72
    %s94 = sphi 0, %s96
    %s97 = sphi 0, %s94
    %s98 = sphi 0, %s97
    %s114 = sphi 0, %s98
    %s120 = sphi 0, %s122
    %s123 = sphi 0, %s120
    %s124 = sphi 0, %s123
    %s140 = sphi 0, %s124
  $region4: #{basic_conv2d_forward.2} parent=0 // loop_header_branch
    %14 = sbr.rel (%p12) target = $region8
  $region5: #{basic_conv2d_forward.2} parent=0 // loop_body
    %s16 = ssub.s32 %s11, 1
    %s17 = ssub.s32 %s11, 2
    %s18 = sadd.s32 %s11, 1
    %s19 = ssub.s32 %s11, %s18
    %p20 = scmp.eq.s32.totalorder %s19, 0
    %s22 = sadd.s32 %s21, 1
    %s23 = scalar_select %p20, %s21, %s22
    %p26 = pneg %p20
    %p27 = scmp.eq.s32.totalorder %s11, 1
    %p28 = por %p26, %p27
    %p29 = scmp.ne.s32.totalorder %s21, %s24
    %p30 = scmp.eq.s32.totalorder %s11, 0
    %p31 = por %p29, %p30
    %p32 = scmp.ne.s32.totalorder %s21, %s24
    %p33 = scmp.eq.s32.totalorder %s16, 1
    %p34 = por %p32, %p33
    %p35 = scmp.ne.s32.totalorder %s24, %s25
    %p36 = scmp.eq.s32.totalorder %s16, 0
    %p37 = por %p35, %p36
    %p38 = scmp.ne.s32.totalorder %s24, %s25
    %p39 = scmp.eq.s32.totalorder %s17, 1
    %p40 = por %p38, %p39
    %p42 = scmp.ne.s32.totalorder %s25, %s41
    %p43 = scmp.eq.s32.totalorder %s17, 0
    %p44 = por %p42, %p43
    %s46 = sadd.s32 %s45, 1
    %p49 = scmp.eq.s32.totalorder %s11, 1
    %p50 = scmp.ne.s32.totalorder %s45, %s47
    %p51 = scmp.eq.s32.totalorder %s11, 0
    %p52 = por %p50, %p51
    %p53 = scmp.ne.s32.totalorder %s45, %s47
    %p54 = scmp.eq.s32.totalorder %s16, 1
    %p55 = por %p53, %p54
    %p56 = scmp.ne.s32.totalorder %s47, %s48
    %p57 = scmp.eq.s32.totalorder %s16, 0
    %p58 = por %p56, %p57
    %p59 = scmp.ne.s32.totalorder %s47, %s48
    %p60 = scmp.eq.s32.totalorder %s17, 1
    %p61 = por %p59, %p60
    %p63 = scmp.ne.s32.totalorder %s48, %s62
    %p64 = scmp.eq.s32.totalorder %s17, 0
    %p65 = por %p63, %p64
    %s66 = ssub.s32 %s11, %s18
    %p67 = scmp.eq.s32.totalorder %s66, 0
    %s69 = sadd.s32 %s68, 1
    %s70 = scalar_select %p67, %s68, %s69
    %p73 = pneg %p67
    %p74 = scmp.eq.s32.totalorder %s11, 1
    %p75 = por %p73, %p74
    %p76 = scmp.ne.s32.totalorder %s68, %s71
    %p77 = scmp.eq.s32.totalorder %s11, 0
    %p78 = por %p76, %p77
    %p79 = scmp.ne.s32.totalorder %s68, %s71
    %p80 = scmp.eq.s32.totalorder %s16, 1
    %p81 = por %p79, %p80
    %p82 = scmp.ne.s32.totalorder %s71, %s72
    %p83 = scmp.eq.s32.totalorder %s16, 0
    %p84 = por %p82, %p83
    %p85 = scmp.ne.s32.totalorder %s71, %s72
    %p86 = scmp.eq.s32.totalorder %s17, 1
    %p87 = por %p85, %p86
    %p89 = scmp.ne.s32.totalorder %s72, %s88
    %p90 = scmp.eq.s32.totalorder %s17, 0
    %p91 = por %p89, %p90
    %s92 = ssub.s32 %s11, %s18
    %p93 = scmp.eq.s32.totalorder %s92, 0
    %s95 = sadd.s32 %s94, 1
    %s96 = scalar_select %p93, %s94, %s95
    %p99 = pneg %p93
    %p100 = scmp.eq.s32.totalorder %s11, 1
    %p101 = por %p99, %p100
    %p102 = scmp.ne.s32.totalorder %s94, %s97
    %p103 = scmp.eq.s32.totalorder %s11, 0
    %p104 = por %p102, %p103
    %p105 = scmp.ne.s32.totalorder %s94, %s97
    %p106 = scmp.eq.s32.totalorder %s16, 1
    %p107 = por %p105, %p106
    %p108 = scmp.ne.s32.totalorder %s97, %s98
    %p109 = scmp.eq.s32.totalorder %s16, 0
    %p110 = por %p108, %p109
    %p111 = scmp.ne.s32.totalorder %s97, %s98
    %p112 = scmp.eq.s32.totalorder %s17, 1
    %p113 = por %p111, %p112
    %p115 = scmp.ne.s32.totalorder %s98, %s114
    %p116 = scmp.eq.s32.totalorder %s17, 0
    %p117 = por %p115, %p116
    %s118 = ssub.s32 %s11, %s18
    %p119 = scmp.eq.s32.totalorder %s118, 0
    %s121 = sadd.s32 %s120, 1
    %s122 = scalar_select %p119, %s120, %s121
    %p125 = pneg %p119
    %p126 = scmp.eq.s32.totalorder %s11, 1
    %p127 = por %p125, %p126
    %p128 = scmp.ne.s32.totalorder %s120, %s123
    %p129 = scmp.eq.s32.totalorder %s11, 0
    %p130 = por %p128, %p129
    %p131 = scmp.ne.s32.totalorder %s120, %s123
    %p132 = scmp.eq.s32.totalorder %s16, 1
    %p133 = por %p131, %p132
    %p134 = scmp.ne.s32.totalorder %s123, %s124
    %p135 = scmp.eq.s32.totalorder %s16, 0
    %p136 = por %p134, %p135
    %p137 = scmp.ne.s32.totalorder %s123, %s124
    %p138 = scmp.eq.s32.totalorder %s17, 1
    %p139 = por %p137, %p138
    %p141 = scmp.ne.s32.totalorder %s124, %s140
    %p142 = scmp.eq.s32.totalorder %s17, 0
    %p143 = por %p141, %p142
    %p144 = scmp.le.s32.totalorder 1, %s11
    %p145 = scmp.lt.s32.totalorder %s11, 3
    %p146 = pnand %p144, %p145
    %p147 = pneg %p146
    // Predicated region
    $region9: #{basic_conv2d_forward.2} parent=5 // pred_check
      _
    $region10: #{basic_conv2d_forward.2} parent=5 // pred_check_branch
      %149 = sbr.rel (%p146) target = $region12
    $region11: #{basic_conv2d_forward.2} parent=5 // pred_region
      %s150 = ssub.s32 %s11, 1
      // Predicated region
      $region13: #{basic_conv2d_forward.2} parent=11 // pred_check
        %p151 = pneg %p58
      $region14: #{basic_conv2d_forward.2} parent=11 // pred_check_branch
        %153 = sbr.rel (%p151) target = $region16
      $region15: #{basic_conv2d_forward.2} parent=11 // pred_region
        _
      $region16: #{basic_conv2d_forward.2} parent=11 // pred_fallthru
        _
    $region12: #{basic_conv2d_forward.2} parent=5 // pred_fallthru
      _
    %p154 = scmp.lt.s32.totalorder %s11, 2
    // Predicated region
    $region17: #{basic_conv2d_forward.2} parent=5 // pred_check
      %p155 = pneg %p154
    $region18: #{basic_conv2d_forward.2} parent=5 // pred_check_branch
      %157 = sbr.rel (%p155) target = $region20
    $region19: #{basic_conv2d_forward.2} parent=5 // pred_region
      // Predicated region
      $region21: #{basic_conv2d_forward.2} parent=19 // pred_check
        %p158 = pneg %p31
      $region22: #{basic_conv2d_forward.2} parent=19 // pred_check_branch
        %160 = sbr.rel (%p158) target = $region24
      $region23: #{basic_conv2d_forward.2} parent=19 // pred_region
        %p161 = scmp.lt.s32.totalorder %s11, 1
        %s162 = scalar_select %p161, %s11, 1
        %s163 = smul.addr %s162, 54
        %s164 = smul.addr %s163, 8
        %s165 = scalar_lea.vmem %s0, %s164
      $region24: #{basic_conv2d_forward.2} parent=19 // pred_fallthru
        _
    $region20: #{basic_conv2d_forward.2} parent=5 // pred_fallthru
      _
    %p166 = scmp.le.s32.totalorder 1, %s11
    %p167 = scmp.lt.s32.totalorder %s11, 3
    %p168 = pnand %p166, %p167
    %p169 = pneg %p168
    // Predicated region
    $region25: #{basic_conv2d_forward.2} parent=5 // pred_check
      _
    $region26: #{basic_conv2d_forward.2} parent=5 // pred_check_branch
      %171 = sbr.rel (%p168) target = $region28
    $region27: #{basic_conv2d_forward.2} parent=5 // pred_region
      %s172 = ssub.s32 %s11, 1
      %p173 = scmp.lt.s32.totalorder %s16, 1
      %s174 = scalar_select %p173, %s16, 1
      %s175 = smul.addr %s174, 54
      %s176 = smul.addr %s175, 8
      %s177 = scalar_lea.vmem %s0, %s176
      %p178 = pneg %p37
      %p179 = pneg %p34
      %p180 = pneg %p58
      %p181 = pneg %p55
      %p182 = pneg %p84
      %p183 = pneg %p81
      %p184 = scmp.lt.s32.totalorder %s16, 1
      %s185 = scalar_select %p184, %s16, 1
      %s186 = smul.addr %s185, 32
      %s187 = smul.addr %s186, 8
      %s188 = scalar_lea.vmem %s2, %s187
      %p189 = pneg %p110
      %p190 = pneg %p107
      %p191 = scmp.lt.s32.totalorder %s16, 1
      %s192 = scalar_select %p191, %s16, 1
      %s193 = scalar_lea.vmem %s3, %s192
      %p194 = pneg %p136
      %p195 = pneg %p133
      %p196 = scmp.lt.s32.totalorder %s16, 1
      %s197 = scalar_select %p196, %s16, 1
      %s198 = scalar_lea.vmem %s4, %s197
      %p199 = scmp.lt.s32.totalorder %s16, 1
      %s200 = scalar_select %p199, %s16, 1
      %s201 = smul.addr %s200, 54
      %s202 = smul.addr %s201, 8
      %s203 = scalar_lea.vmem %s0, %s202
      %p204 = scmp.lt.s32.totalorder %s16, 1
      %s205 = scalar_select %p204, %s16, 1
      %s206 = smul.addr %s205, 32
      %s207 = smul.addr %s206, 8
      %s208 = scalar_lea.vmem %s2, %s207
      %p209 = scmp.lt.s32.totalorder %s16, 1
      %s210 = scalar_select %p209, %s16, 1
      %s211 = scalar_lea.vmem %s3, %s210
      %p212 = scmp.lt.s32.totalorder %s16, 1
      %s213 = scalar_select %p212, %s16, 1
      %s214 = scalar_lea.vmem %s4, %s213
      %v215 = vld [vmem:[%s203] sm:$0xff]
      %v216 = vld [vmem:[%s203 + $0x8] sm:$0xff]
      %v217 = vld [vmem:[%s203 + $0x10] sm:$0x3]
      %v218 = vld [vmem:[%s203 + $0x18] sm:$0xff]
      %v219 = vld [vmem:[%s203 + $0x20] sm:$0xff]
      %v220 = vld [vmem:[%s203 + $0x28] sm:$0x3]
      %v221 = vld [vmem:[%s203 + $0x30] sm:$0xff]
      %v222 = vld [vmem:[%s203 + $0x38] sm:$0xff]
      %v223 = vld [vmem:[%s203 + $0x40] sm:$0x3]
      %v224 = vld [vmem:[%s203 + $0x48] sm:$0xff]
      %v225 = vld [vmem:[%s203 + $0x50] sm:$0xff]
      %v226 = vld [vmem:[%s203 + $0x58] sm:$0x3]
      %v227 = vld [vmem:[%s203 + $0x60] sm:$0xff]
      %v228 = vld [vmem:[%s203 + $0x68] sm:$0xff]
      %v229 = vld [vmem:[%s203 + $0x70] sm:$0x3]
      %v230 = vld [vmem:[%s203 + $0x78] sm:$0xff]
      %v231 = vld [vmem:[%s203 + $0x80] sm:$0xff]
      %v232 = vld [vmem:[%s203 + $0x88] sm:$0x3]
      %v233 = vld [vmem:[%s203 + $0x90] sm:$0xff]
      %v234 = vld [vmem:[%s203 + $0x98] sm:$0xff]
      %v235 = vld [vmem:[%s203 + $0xa0] sm:$0x3]
      %v236 = vld [vmem:[%s203 + $0xa8] sm:$0xff]
      %v237 = vld [vmem:[%s203 + $0xb0] sm:$0xff]
      %v238 = vld [vmem:[%s203 + $0xb8] sm:$0x3]
      %v239 = vld [vmem:[%s203 + $0xc0] sm:$0xff]
      %v240 = vld [vmem:[%s203 + $0xc8] sm:$0xff]
      %v241 = vld [vmem:[%s203 + $0xd0] sm:$0x3]
      %v242 = vld [vmem:[%s203 + $0xd8] sm:$0xff]
      %v243 = vld [vmem:[%s203 + $0xe0] sm:$0xff]
      %v244 = vld [vmem:[%s203 + $0xe8] sm:$0x3]
      %v245 = vld [vmem:[%s203 + $0xf0] sm:$0xff]
      %v246 = vld [vmem:[%s203 + $0xf8] sm:$0xff]
      %v247 = vld [vmem:[%s203 + $0x100] sm:$0x3]
      %v248 = vld [vmem:[%s203 + $0x108] sm:$0xff]
      %v249 = vld [vmem:[%s203 + $0x110] sm:$0xff]
      %v250 = vld [vmem:[%s203 + $0x118] sm:$0x3]
      %v251 = vld [vmem:[%s203 + $0x120] sm:$0xff]
      %v252 = vld [vmem:[%s203 + $0x128] sm:$0xff]
      %v253 = vld [vmem:[%s203 + $0x130] sm:$0x3]
      %v254 = vld [vmem:[%s203 + $0x138] sm:$0xff]
      %v255 = vld [vmem:[%s203 + $0x140] sm:$0xff]
      %v256 = vld [vmem:[%s203 + $0x148] sm:$0x3]
      %v257 = vld [vmem:[%s203 + $0x150] sm:$0xff]
      %v258 = vld [vmem:[%s203 + $0x158] sm:$0xff]
      %v259 = vld [vmem:[%s203 + $0x160] sm:$0x3]
      %v260 = vld [vmem:[%s203 + $0x168] sm:$0xff]
      %v261 = vld [vmem:[%s203 + $0x170] sm:$0xff]
      %v262 = vld [vmem:[%s203 + $0x178] sm:$0x3]
      %v263 = vld [vmem:[%s203 + $0x180] sm:$0xff]
      %v264 = vld [vmem:[%s203 + $0x188] sm:$0xff]
      %v265 = vld [vmem:[%s203 + $0x190] sm:$0x3]
      %v266 = vld [vmem:[%s203 + $0x198] sm:$0xff]
      %v267 = vld [vmem:[%s203 + $0x1a0] sm:$0xff]
      %v268 = vld [vmem:[%s203 + $0x1a8] sm:$0x3]
      %vm317 = vcmask 1046528
      %v318 = vrot.slane %v215, 1
      %v319 = vrot.slane %v216, 1
      %v320 = vsel %vm317, %v318, %v319
      %v321 = vrot.slane %v217, 1
      %v322 = vsel %vm317, %v319, %v321
      %v323 = vrot.slane %v218, 1
      %v324 = vrot.slane %v219, 1
      %v325 = vsel %vm317, %v323, %v324
      %v326 = vrot.slane %v220, 1
      %v327 = vsel %vm317, %v324, %v326
      %v328 = vrot.slane %v221, 1
      %v329 = vrot.slane %v222, 1
      %v330 = vsel %vm317, %v328, %v329
      %v331 = vrot.slane %v223, 1
      %v332 = vsel %vm317, %v329, %v331
      %v333 = vrot.slane %v224, 1
      %v334 = vrot.slane %v225, 1
      %v335 = vsel %vm317, %v333, %v334
      %v336 = vrot.slane %v226, 1
      %v337 = vsel %vm317, %v334, %v336
      %v338 = vrot.slane %v227, 1
      %v339 = vrot.slane %v228, 1
      %v340 = vsel %vm317, %v338, %v339
      %v341 = vrot.slane %v229, 1
      %v342 = vsel %vm317, %v339, %v341
      %v343 = vrot.slane %v230, 1
      %v344 = vrot.slane %v231, 1
      %v345 = vsel %vm317, %v343, %v344
      %v346 = vrot.slane %v232, 1
      %v347 = vsel %vm317, %v344, %v346
      %v348 = vrot.slane %v233, 1
      %v349 = vrot.slane %v234, 1
      %v350 = vsel %vm317, %v348, %v349
      %v351 = vrot.slane %v235, 1
      %v352 = vsel %vm317, %v349, %v351
      %v353 = vrot.slane %v236, 1
      %v354 = vrot.slane %v237, 1
      %v355 = vsel %vm317, %v353, %v354
      %v356 = vrot.slane %v238, 1
      %v357 = vsel %vm317, %v354, %v356
      %v358 = vrot.slane %v239, 1
      %v359 = vrot.slane %v240, 1
      %v360 = vsel %vm317, %v358, %v359
      %v361 = vrot.slane %v241, 1
      %v362 = vsel %vm317, %v359, %v361
      %v363 = vrot.slane %v242, 1
      %v364 = vrot.slane %v243, 1
      %v365 = vsel %vm317, %v363, %v364
      %v366 = vrot.slane %v244, 1
      %v367 = vsel %vm317, %v364, %v366
      %v368 = vrot.slane %v245, 1
      %v369 = vrot.slane %v246, 1
      %v370 = vsel %vm317, %v368, %v369
      %v371 = vrot.slane %v247, 1
      %v372 = vsel %vm317, %v369, %v371
      %v373 = vrot.slane %v248, 1
      %v374 = vrot.slane %v249, 1
      %v375 = vsel %vm317, %v373, %v374
      %v376 = vrot.slane %v250, 1
      %v377 = vsel %vm317, %v374, %v376
      %v378 = vrot.slane %v251, 1
      %v379 = vrot.slane %v252, 1
      %v380 = vsel %vm317, %v378, %v379
      %v381 = vrot.slane %v253, 1
      %v382 = vsel %vm317, %v379, %v381
      %v383 = vrot.slane %v254, 1
      %v384 = vrot.slane %v255, 1
      %v385 = vsel %vm317, %v383, %v384
      %v386 = vrot.slane %v256, 1
      %v387 = vsel %vm317, %v384, %v386
      %v388 = vrot.slane %v257, 1
      %v389 = vrot.slane %v258, 1
      %v390 = vsel %vm317, %v388, %v389
      %v391 = vrot.slane %v259, 1
      %v392 = vsel %vm317, %v389, %v391
      %v393 = vrot.slane %v260, 1
      %v394 = vrot.slane %v261, 1
      %v395 = vsel %vm317, %v393, %v394
      %v396 = vrot.slane %v262, 1
      %v397 = vsel %vm317, %v394, %v396
      %vm430 = vcmask 1045504
      %v431 = vrot.slane %v215, 2
      %v432 = vrot.slane %v216, 2
      %v433 = vsel %vm430, %v431, %v432
      %v434 = vrot.slane %v217, 2
      %v435 = vsel %vm430, %v432, %v434
      %v436 = vrot.slane %v218, 2
      %v437 = vrot.slane %v219, 2
      %v438 = vsel %vm430, %v436, %v437
      %v439 = vrot.slane %v220, 2
      %v440 = vsel %vm430, %v437, %v439
      %v441 = vrot.slane %v221, 2
      %v442 = vrot.slane %v222, 2
      %v443 = vsel %vm430, %v441, %v442
      %v444 = vrot.slane %v223, 2
      %v445 = vsel %vm430, %v442, %v444
      %v446 = vrot.slane %v224, 2
      %v447 = vrot.slane %v225, 2
      %v448 = vsel %vm430, %v446, %v447
      %v449 = vrot.slane %v226, 2
      %v450 = vsel %vm430, %v447, %v449
      %v451 = vrot.slane %v227, 2
      %v452 = vrot.slane %v228, 2
      %v453 = vsel %vm430, %v451, %v452
      %v454 = vrot.slane %v229, 2
      %v455 = vsel %vm430, %v452, %v454
      %v456 = vrot.slane %v230, 2
      %v457 = vrot.slane %v231, 2
      %v458 = vsel %vm430, %v456, %v457
      %v459 = vrot.slane %v232, 2
      %v460 = vsel %vm430, %v457, %v459
      %v461 = vrot.slane %v233, 2
      %v462 = vrot.slane %v234, 2
      %v463 = vsel %vm430, %v461, %v462
      %v464 = vrot.slane %v235, 2
      %v465 = vsel %vm430, %v462, %v464
      %v466 = vrot.slane %v236, 2
      %v467 = vrot.slane %v237, 2
      %v468 = vsel %vm430, %v466, %v467
      %v469 = vrot.slane %v238, 2
      %v470 = vsel %vm430, %v467, %v469
      %v471 = vrot.slane %v239, 2
      %v472 = vrot.slane %v240, 2
      %v473 = vsel %vm430, %v471, %v472
      %v474 = vrot.slane %v241, 2
      %v475 = vsel %vm430, %v472, %v474
      %v476 = vrot.slane %v242, 2
      %v477 = vrot.slane %v243, 2
      %v478 = vsel %vm430, %v476, %v477
      %v479 = vrot.slane %v244, 2
      %v480 = vsel %vm430, %v477, %v479
      %v481 = vrot.slane %v245, 2
      %v482 = vrot.slane %v246, 2
      %v483 = vsel %vm430, %v481, %v482
      %v484 = vrot.slane %v247, 2
      %v485 = vsel %vm430, %v482, %v484
      %v486 = vrot.slane %v248, 2
      %v487 = vrot.slane %v249, 2
      %v488 = vsel %vm430, %v486, %v487
      %v489 = vrot.slane %v250, 2
      %v490 = vsel %vm430, %v487, %v489
      %v491 = vrot.slane %v251, 2
      %v492 = vrot.slane %v252, 2
      %v493 = vsel %vm430, %v491, %v492
      %v494 = vrot.slane %v253, 2
      %v495 = vsel %vm430, %v492, %v494
      %v496 = vrot.slane %v254, 2
      %v497 = vrot.slane %v255, 2
      %v498 = vsel %vm430, %v496, %v497
      %v499 = vrot.slane %v256, 2
      %v500 = vsel %vm430, %v497, %v499
      %v501 = vrot.slane %v257, 2
      %v502 = vrot.slane %v258, 2
      %v503 = vsel %vm430, %v501, %v502
      %v504 = vrot.slane %v259, 2
      %v505 = vsel %vm430, %v502, %v504
      %v506 = vrot.slane %v260, 2
      %v507 = vrot.slane %v261, 2
      %v508 = vsel %vm430, %v506, %v507
      %v509 = vrot.slane %v262, 2
      %v510 = vsel %vm430, %v507, %v509
      %v546 = vrot.slane %v263, 1
      %v547 = vrot.slane %v264, 1
      %v548 = vsel %vm317, %v546, %v547
      %v549 = vrot.slane %v265, 1
      %v550 = vsel %vm317, %v547, %v549
      %v553 = vrot.slane %v263, 2
      %v554 = vrot.slane %v264, 2
      %v555 = vsel %vm430, %v553, %v554
      %v556 = vrot.slane %v265, 2
      %v557 = vsel %vm430, %v554, %v556
      %v563 = vrot.slane %v266, 1
      %v564 = vrot.slane %v267, 1
      %v565 = vsel %vm317, %v563, %v564
      %v566 = vrot.slane %v268, 1
      %v567 = vsel %vm317, %v564, %v566
      %v570 = vrot.slane %v266, 2
      %v571 = vrot.slane %v267, 2
      %v572 = vsel %vm430, %v570, %v571
      %v573 = vrot.slane %v268, 2
      %v574 = vsel %vm430, %v571, %v573
      %v577 = vld [vmem:[%s1] sm:$0xff]
      %v578 = vld [vmem:[%s1 + $0x8] sm:$0xff]
      %v579 = vld [vmem:[%s1 + $0x10] sm:$0xff]
      %v580 = vld [vmem:[%s1 + $0x18] sm:$0xff]
      %v581 = vld [vmem:[%s1 + $0x20] sm:$0xff]
      %v582 = vld [vmem:[%s1 + $0x28] sm:$0xff]
      %v583 = vld [vmem:[%s1 + $0x30] sm:$0xff]
      %v584 = vld [vmem:[%s1 + $0x38] sm:$0xff]
      %v585 = vld [vmem:[%s1 + $0x40] sm:$0xff]
      %v586 = vld [vmem:[%s1 + $0x48] sm:$0xff]
      %v587 = vld [vmem:[%s1 + $0x50] sm:$0xff]
      %v588 = vld [vmem:[%s1 + $0x58] sm:$0xff]
      %v589 = vld [vmem:[%s1 + $0x60] sm:$0xff]
      %v590 = vld [vmem:[%s1 + $0x68] sm:$0xff]
      %v591 = vld [vmem:[%s1 + $0x70] sm:$0xff]
      %v592 = vld [vmem:[%s1 + $0x78] sm:$0xff]
      %v593 = vld [vmem:[%s1 + $0x80] sm:$0xff]
      %v594 = vld [vmem:[%s1 + $0x88] sm:$0xff]
      %v595 = vld [vmem:[%s1 + $0x90] sm:$0xff]
      %v596 = vld [vmem:[%s1 + $0x98] sm:$0xff]
      %v597 = vld [vmem:[%s1 + $0xa0] sm:$0xff]
      %v598 = vld [vmem:[%s1 + $0xa8] sm:$0xff]
      %v599 = vld [vmem:[%s1 + $0xb0] sm:$0xff]
      %v600 = vld [vmem:[%s1 + $0xb8] sm:$0xff]
      %v601 = vld [vmem:[%s1 + $0xc0] sm:$0xff]
      %v602 = vld [vmem:[%s1 + $0xc8] sm:$0xff]
      %v603 = vld [vmem:[%s1 + $0xd0] sm:$0xff]
      %v604 = vld [vmem:[%s1 + $0xd8] sm:$0xff]
      %v605 = vld [vmem:[%s1 + $0xe0] sm:$0xff]
      %v606 = vld [vmem:[%s1 + $0xe8] sm:$0xff]
      %v607 = vld [vmem:[%s1 + $0xf0] sm:$0xff]
      %v608 = vld [vmem:[%s1 + $0xf8] sm:$0xff]
      %v609 = vld [vmem:[%s1 + $0x100] sm:$0xff]
      %v610 = vld [vmem:[%s1 + $0x108] sm:$0xff]
      %v611 = vld [vmem:[%s1 + $0x110] sm:$0xff]
      %v612 = vld [vmem:[%s1 + $0x118] sm:$0xff]
      %v613 = vld [vmem:[%s1 + $0x120] sm:$0xff]
      %v614 = vld [vmem:[%s1 + $0x128] sm:$0xff]
      %v615 = vld [vmem:[%s1 + $0x130] sm:$0xff]
      %v616 = vld [vmem:[%s1 + $0x138] sm:$0xff]
      %v617 = vld [vmem:[%s1 + $0x140] sm:$0xff]
      %v618 = vld [vmem:[%s1 + $0x148] sm:$0xff]
      %v619 = vld [vmem:[%s1 + $0x150] sm:$0xff]
      %v620 = vld [vmem:[%s1 + $0x158] sm:$0xff]
      %v621 = vld [vmem:[%s1 + $0x160] sm:$0xff]
      %v622 = vld [vmem:[%s1 + $0x168] sm:$0xff]
      %v623 = vld [vmem:[%s1 + $0x170] sm:$0xff]
      %v624 = vld [vmem:[%s1 + $0x178] sm:$0xff]
      %v625 = vld [vmem:[%s1 + $0x180] sm:$0xff]
      %v626 = vld [vmem:[%s1 + $0x188] sm:$0xff]
      %v627 = vld [vmem:[%s1 + $0x190] sm:$0xff]
      %v628 = vld [vmem:[%s1 + $0x198] sm:$0xff]
      %v629 = vld [vmem:[%s1 + $0x1a0] sm:$0xff]
      %v630 = vld [vmem:[%s1 + $0x1a8] sm:$0xff]
      %v631 = vld [vmem:[%s1 + $0x1b0] sm:$0xff]
      %v632 = vld [vmem:[%s1 + $0x1b8] sm:$0xff]
      %v633 = vld [vmem:[%s1 + $0x1c0] sm:$0xff]
      %v634 = vld [vmem:[%s1 + $0x1c8] sm:$0xff]
      %v635 = vld [vmem:[%s1 + $0x1d0] sm:$0xff]
      %v636 = vld [vmem:[%s1 + $0x1d8] sm:$0xff]
      %v637 = vld [vmem:[%s1 + $0x1e0] sm:$0xff]
      %v638 = vld [vmem:[%s1 + $0x1e8] sm:$0xff]
      %v639 = vld [vmem:[%s1 + $0x1f0] sm:$0xff]
      %v640 = vld [vmem:[%s1 + $0x1f8] sm:$0xff]
      %v641 = vld [vmem:[%s1 + $0x200] sm:$0xff]
      %v642 = vld [vmem:[%s1 + $0x208] sm:$0xff]
      %v643 = vld [vmem:[%s1 + $0x210] sm:$0xff]
      %v644 = vld [vmem:[%s1 + $0x218] sm:$0xff]
      %v645 = vld [vmem:[%s1 + $0x220] sm:$0xff]
      %v646 = vld [vmem:[%s1 + $0x228] sm:$0xff]
      %v647 = vld [vmem:[%s1 + $0x230] sm:$0xff]
      %v648 = vld [vmem:[%s1 + $0x238] sm:$0xff]
      %v649 = vld [vmem:[%s1 + $0x240] sm:$0xff]
      %v650 = vld [vmem:[%s1 + $0x248] sm:$0xff]
      %v651 = vld [vmem:[%s1 + $0x250] sm:$0xff]
      %v652 = vld [vmem:[%s1 + $0x258] sm:$0xff]
      %v653 = vld [vmem:[%s1 + $0x260] sm:$0xff]
      %v654 = vld [vmem:[%s1 + $0x268] sm:$0xff]
      %v655 = vld [vmem:[%s1 + $0x270] sm:$0xff]
      %v656 = vld [vmem:[%s1 + $0x278] sm:$0xff]
      %v657 = vld [vmem:[%s1 + $0x280] sm:$0xff]
      %v658 = vld [vmem:[%s1 + $0x288] sm:$0xff]
      %v659 = vld [vmem:[%s1 + $0x290] sm:$0xff]
      %v660 = vld [vmem:[%s1 + $0x298] sm:$0xff]
      %v661 = vld [vmem:[%s1 + $0x2a0] sm:$0xff]
      %v662 = vld [vmem:[%s1 + $0x2a8] sm:$0xff]
      %v663 = vld [vmem:[%s1 + $0x2b0] sm:$0xff]
      %v664 = vld [vmem:[%s1 + $0x2b8] sm:$0xff]
      %v665 = vld [vmem:[%s1 + $0x2c0] sm:$0xff]
      %v666 = vld [vmem:[%s1 + $0x2c8] sm:$0xff]
      %v667 = vld [vmem:[%s1 + $0x2d0] sm:$0xff]
      %v668 = vld [vmem:[%s1 + $0x2d8] sm:$0xff]
      %v669 = vld [vmem:[%s1 + $0x2e0] sm:$0xff]
      %v670 = vld [vmem:[%s1 + $0x2e8] sm:$0xff]
      %v671 = vld [vmem:[%s1 + $0x2f0] sm:$0xff]
      %v672 = vld [vmem:[%s1 + $0x2f8] sm:$0xff]
      %v673 = vld [vmem:[%s1 + $0x300] sm:$0xff]
      %v674 = vld [vmem:[%s1 + $0x308] sm:$0xff]
      %v675 = vld [vmem:[%s1 + $0x310] sm:$0xff]
      %v676 = vld [vmem:[%s1 + $0x318] sm:$0xff]
      %v677 = vld [vmem:[%s1 + $0x320] sm:$0xff]
      %v678 = vld [vmem:[%s1 + $0x328] sm:$0xff]
      %v679 = vld [vmem:[%s1 + $0x330] sm:$0xff]
      %v680 = vld [vmem:[%s1 + $0x338] sm:$0xff]
      %v681 = vld [vmem:[%s1 + $0x340] sm:$0xff]
      %v682 = vld [vmem:[%s1 + $0x348] sm:$0xff]
      %v683 = vld [vmem:[%s1 + $0x350] sm:$0xff]
      %v684 = vld [vmem:[%s1 + $0x358] sm:$0xff]
      %v685 = vld [vmem:[%s1 + $0x360] sm:$0xff]
      %v686 = vld [vmem:[%s1 + $0x368] sm:$0xff]
      %v687 = vld [vmem:[%s1 + $0x370] sm:$0xff]
      %v688 = vld [vmem:[%s1 + $0x378] sm:$0xff]
      %v689 = vld [vmem:[%s1 + $0x380] sm:$0xff]
      %v690 = vld [vmem:[%s1 + $0x388] sm:$0xff]
      %v691 = vld [vmem:[%s1 + $0x390] sm:$0xff]
      %v692 = vld [vmem:[%s1 + $0x398] sm:$0xff]
      %v693 = vld [vmem:[%s1 + $0x3a0] sm:$0xff]
      %v694 = vld [vmem:[%s1 + $0x3a8] sm:$0xff]
      %v695 = vld [vmem:[%s1 + $0x3b0] sm:$0xff]
      %v696 = vld [vmem:[%s1 + $0x3b8] sm:$0xff]
      %v697 = vld [vmem:[%s1 + $0x3c0] sm:$0xff]
      %v698 = vld [vmem:[%s1 + $0x3c8] sm:$0xff]
      %v699 = vld [vmem:[%s1 + $0x3d0] sm:$0xff]
      %v700 = vld [vmem:[%s1 + $0x3d8] sm:$0xff]
      %v701 = vld [vmem:[%s1 + $0x3e0] sm:$0xff]
      %v702 = vld [vmem:[%s1 + $0x3e8] sm:$0xff]
      %v703 = vld [vmem:[%s1 + $0x3f0] sm:$0xff]
      %v704 = vld [vmem:[%s1 + $0x3f8] sm:$0xff]
      %v705 = vld [vmem:[%s1 + $0x400] sm:$0xff]
      %v706 = vld [vmem:[%s1 + $0x408] sm:$0xff]
      %v707 = vld [vmem:[%s1 + $0x410] sm:$0xff]
      %v708 = vld [vmem:[%s1 + $0x418] sm:$0xff]
      %v709 = vld [vmem:[%s1 + $0x420] sm:$0xff]
      %v710 = vld [vmem:[%s1 + $0x428] sm:$0xff]
      %v711 = vld [vmem:[%s1 + $0x430] sm:$0xff]
      %v712 = vld [vmem:[%s1 + $0x438] sm:$0xff]
      %v713 = vld [vmem:[%s1 + $0x440] sm:$0xff]
      %v714 = vld [vmem:[%s1 + $0x448] sm:$0xff]
      %v715 = vld [vmem:[%s1 + $0x450] sm:$0xff]
      %v716 = vld [vmem:[%s1 + $0x458] sm:$0xff]
      %v717 = vld [vmem:[%s1 + $0x460] sm:$0xff]
      %v718 = vld [vmem:[%s1 + $0x468] sm:$0xff]
      %v719 = vld [vmem:[%s1 + $0x470] sm:$0xff]
      %v720 = vld [vmem:[%s1 + $0x478] sm:$0xff]
      %721 = vmatpush.msra.mxu0 %v592
      %722 = vmatpush.msra.mxu0 %v591
      %723 = vmatpush.msra.mxu0 %v590
      %724 = vmatpush.msra.mxu0 %v589
      %725 = vmatpush.msra.mxu0 %v588
      %726 = vmatpush.msra.mxu0 %v587
      %727 = vmatpush.msra.mxu0 %v586
      %728 = vmatpush.msra.mxu0 %v585
      %729 = vmatpush.msra.mxu0 %v584
      %730 = vmatpush.msra.mxu0 %v583
      %731 = vmatpush.msra.mxu0 %v582
      %732 = vmatpush.msra.mxu0 %v581
      %733 = vmatpush.msra.mxu0 %v580
      %734 = vmatpush.msra.mxu0 %v579
      %735 = vmatpush.msra.mxu0 %v578
      %736 = vmatpush.msra.mxu0 %v577
      %737 = vmatmul.f32.gmra.mxu0 %v215
      %v738 = vpop.f32.mrf.mxu0
      %v739 = vadd.f32 0.0, %v738
      %740 = vmatmul.f32.gmra.mxu0 %v216
      %v741 = vpop.f32.mrf.mxu0
      %v742 = vadd.f32 0.0, %v741
      %743 = vmatmul.f32.gmra.mxu0 %v218
      %v744 = vpop.f32.mrf.mxu0
      %v745 = vadd.f32 0.0, %v744
      %746 = vmatmul.f32.gmra.mxu0 %v219
      %v747 = vpop.f32.mrf.mxu0
      %v748 = vadd.f32 0.0, %v747
      %749 = vmatmul.f32.gmra.mxu0 %v221
      %v750 = vpop.f32.mrf.mxu0
      %v751 = vadd.f32 0.0, %v750
      %752 = vmatmul.f32.gmra.mxu0 %v222
      %v753 = vpop.f32.mrf.mxu0
      %v754 = vadd.f32 0.0, %v753
      %755 = vmatmul.f32.gmra.mxu0 %v224
      %v756 = vpop.f32.mrf.mxu0
      %v757 = vadd.f32 0.0, %v756
      %758 = vmatmul.f32.gmra.mxu0 %v225
      %v759 = vpop.f32.mrf.mxu0
      %v760 = vadd.f32 0.0, %v759
      %761 = vmatmul.f32.gmra.mxu0 %v227
      %v762 = vpop.f32.mrf.mxu0
      %v763 = vadd.f32 0.0, %v762
      %764 = vmatmul.f32.gmra.mxu0 %v228
      %v765 = vpop.f32.mrf.mxu0
      %v766 = vadd.f32 0.0, %v765
      %767 = vmatmul.f32.gmra.mxu0 %v230
      %v768 = vpop.f32.mrf.mxu0
      %v769 = vadd.f32 0.0, %v768
      %770 = vmatmul.f32.gmra.mxu0 %v231
      %v771 = vpop.f32.mrf.mxu0
      %v772 = vadd.f32 0.0, %v771
      %773 = vmatmul.f32.gmra.mxu0 %v233
      %v774 = vpop.f32.mrf.mxu0
      %v775 = vadd.f32 0.0, %v774
      %776 = vmatmul.f32.gmra.mxu0 %v234
      %v777 = vpop.f32.mrf.mxu0
      %v778 = vadd.f32 0.0, %v777
      %779 = vmatmul.f32.gmra.mxu0 %v236
      %v780 = vpop.f32.mrf.mxu0
      %v781 = vadd.f32 0.0, %v780
      %782 = vmatmul.f32.gmra.mxu0 %v237
      %v783 = vpop.f32.mrf.mxu0
      %v784 = vadd.f32 0.0, %v783
      %785 = vmatmul.f32.gmra.mxu0 %v239
      %v786 = vpop.f32.mrf.mxu0
      %v787 = vadd.f32 0.0, %v786
      %788 = vmatmul.f32.gmra.mxu0 %v240
      %v789 = vpop.f32.mrf.mxu0
      %v790 = vadd.f32 0.0, %v789
      %791 = vmatmul.f32.gmra.mxu0 %v242
      %v792 = vpop.f32.mrf.mxu0
      %v793 = vadd.f32 0.0, %v792
      %794 = vmatmul.f32.gmra.mxu0 %v243
      %v795 = vpop.f32.mrf.mxu0
      %v796 = vadd.f32 0.0, %v795
      %797 = vmatmul.f32.gmra.mxu0 %v245
      %v798 = vpop.f32.mrf.mxu0
      %v799 = vadd.f32 0.0, %v798
      %800 = vmatmul.f32.gmra.mxu0 %v246
      %v801 = vpop.f32.mrf.mxu0
      %v802 = vadd.f32 0.0, %v801
      %803 = vmatmul.f32.gmra.mxu0 %v248
      %v804 = vpop.f32.mrf.mxu0
      %v805 = vadd.f32 0.0, %v804
      %806 = vmatmul.f32.gmra.mxu0 %v249
      %v807 = vpop.f32.mrf.mxu0
      %v808 = vadd.f32 0.0, %v807
      %809 = vmatmul.f32.gmra.mxu0 %v251
      %v810 = vpop.f32.mrf.mxu0
      %v811 = vadd.f32 0.0, %v810
      %812 = vmatmul.f32.gmra.mxu0 %v252
      %v813 = vpop.f32.mrf.mxu0
      %v814 = vadd.f32 0.0, %v813
      %815 = vmatmul.f32.gmra.mxu0 %v254
      %v816 = vpop.f32.mrf.mxu0
      %v817 = vadd.f32 0.0, %v816
      %818 = vmatmul.f32.gmra.mxu0 %v255
      %v819 = vpop.f32.mrf.mxu0
      %v820 = vadd.f32 0.0, %v819
      %821 = vmatmul.f32.gmra.mxu0 %v257
      %v822 = vpop.f32.mrf.mxu0
      %v823 = vadd.f32 0.0, %v822
      %824 = vmatmul.f32.gmra.mxu0 %v258
      %v825 = vpop.f32.mrf.mxu0
      %v826 = vadd.f32 0.0, %v825
      %827 = vmatmul.f32.gmra.mxu0 %v260
      %v828 = vpop.f32.mrf.mxu0
      %v829 = vadd.f32 0.0, %v828
      %830 = vmatmul.f32.gmra.mxu0 %v261
      %v831 = vpop.f32.mrf.mxu0
      %v832 = vadd.f32 0.0, %v831
      %833 = vdwg.mxu0
      %834 = vmatpush.msra.mxu0 %v608
      %835 = vmatpush.msra.mxu0 %v607
      %836 = vmatpush.msra.mxu0 %v606
      %837 = vmatpush.msra.mxu0 %v605
      %838 = vmatpush.msra.mxu0 %v604
      %839 = vmatpush.msra.mxu0 %v603
      %840 = vmatpush.msra.mxu0 %v602
      %841 = vmatpush.msra.mxu0 %v601
      %842 = vmatpush.msra.mxu0 %v600
      %843 = vmatpush.msra.mxu0 %v599
      %844 = vmatpush.msra.mxu0 %v598
      %845 = vmatpush.msra.mxu0 %v597
      %846 = vmatpush.msra.mxu0 %v596
      %847 = vmatpush.msra.mxu0 %v595
      %848 = vmatpush.msra.mxu0 %v594
      %849 = vmatpush.msra.mxu0 %v593
      %850 = vmatmul.f32.gmra.mxu0 %v320
      %v851 = vpop.f32.mrf.mxu0
      %v852 = vadd.f32 %v739, %v851
      %853 = vmatmul.f32.gmra.mxu0 %v322
      %v854 = vpop.f32.mrf.mxu0
      %v855 = vadd.f32 %v742, %v854
      %856 = vmatmul.f32.gmra.mxu0 %v325
      %v857 = vpop.f32.mrf.mxu0
      %v858 = vadd.f32 %v745, %v857
      %859 = vmatmul.f32.gmra.mxu0 %v327
      %v860 = vpop.f32.mrf.mxu0
      %v861 = vadd.f32 %v748, %v860
      %862 = vmatmul.f32.gmra.mxu0 %v330
      %v863 = vpop.f32.mrf.mxu0
      %v864 = vadd.f32 %v751, %v863
      %865 = vmatmul.f32.gmra.mxu0 %v332
      %v866 = vpop.f32.mrf.mxu0
      %v867 = vadd.f32 %v754, %v866
      %868 = vmatmul.f32.gmra.mxu0 %v335
      %v869 = vpop.f32.mrf.mxu0
      %v870 = vadd.f32 %v757, %v869
      %871 = vmatmul.f32.gmra.mxu0 %v337
      %v872 = vpop.f32.mrf.mxu0
      %v873 = vadd.f32 %v760, %v872
      %874 = vmatmul.f32.gmra.mxu0 %v340
      %v875 = vpop.f32.mrf.mxu0
      %v876 = vadd.f32 %v763, %v875
      %877 = vmatmul.f32.gmra.mxu0 %v342
      %v878 = vpop.f32.mrf.mxu0
      %v879 = vadd.f32 %v766, %v878
      %880 = vmatmul.f32.gmra.mxu0 %v345
      %v881 = vpop.f32.mrf.mxu0
      %v882 = vadd.f32 %v769, %v881
      %883 = vmatmul.f32.gmra.mxu0 %v347
      %v884 = vpop.f32.mrf.mxu0
      %v885 = vadd.f32 %v772, %v884
      %886 = vmatmul.f32.gmra.mxu0 %v350
      %v887 = vpop.f32.mrf.mxu0
      %v888 = vadd.f32 %v775, %v887
      %889 = vmatmul.f32.gmra.mxu0 %v352
      %v890 = vpop.f32.mrf.mxu0
      %v891 = vadd.f32 %v778, %v890
      %892 = vmatmul.f32.gmra.mxu0 %v355
      %v893 = vpop.f32.mrf.mxu0
      %v894 = vadd.f32 %v781, %v893
      %895 = vmatmul.f32.gmra.mxu0 %v357
      %v896 = vpop.f32.mrf.mxu0
      %v897 = vadd.f32 %v784, %v896
      %898 = vmatmul.f32.gmra.mxu0 %v360
      %v899 = vpop.f32.mrf.mxu0
      %v900 = vadd.f32 %v787, %v899
      %901 = vmatmul.f32.gmra.mxu0 %v362
      %v902 = vpop.f32.mrf.mxu0
      %v903 = vadd.f32 %v790, %v902
      %904 = vmatmul.f32.gmra.mxu0 %v365
      %v905 = vpop.f32.mrf.mxu0
      %v906 = vadd.f32 %v793, %v905
      %907 = vmatmul.f32.gmra.mxu0 %v367
      %v908 = vpop.f32.mrf.mxu0
      %v909 = vadd.f32 %v796, %v908
      %910 = vmatmul.f32.gmra.mxu0 %v370
      %v911 = vpop.f32.mrf.mxu0
      %v912 = vadd.f32 %v799, %v911
      %913 = vmatmul.f32.gmra.mxu0 %v372
      %v914 = vpop.f32.mrf.mxu0
      %v915 = vadd.f32 %v802, %v914
      %916 = vmatmul.f32.gmra.mxu0 %v375
      %v917 = vpop.f32.mrf.mxu0
      %v918 = vadd.f32 %v805, %v917
      %919 = vmatmul.f32.gmra.mxu0 %v377
      %v920 = vpop.f32.mrf.mxu0
      %v921 = vadd.f32 %v808, %v920
      %922 = vmatmul.f32.gmra.mxu0 %v380
      %v923 = vpop.f32.mrf.mxu0
      %v924 = vadd.f32 %v811, %v923
      %925 = vmatmul.f32.gmra.mxu0 %v382
      %v926 = vpop.f32.mrf.mxu0
      %v927 = vadd.f32 %v814, %v926
      %928 = vmatmul.f32.gmra.mxu0 %v385
      %v929 = vpop.f32.mrf.mxu0
      %v930 = vadd.f32 %v817, %v929
      %931 = vmatmul.f32.gmra.mxu0 %v387
      %v932 = vpop.f32.mrf.mxu0
      %v933 = vadd.f32 %v820, %v932
      %934 = vmatmul.f32.gmra.mxu0 %v390
      %v935 = vpop.f32.mrf.mxu0
      %v936 = vadd.f32 %v823, %v935
      %937 = vmatmul.f32.gmra.mxu0 %v392
      %v938 = vpop.f32.mrf.mxu0
      %v939 = vadd.f32 %v826, %v938
      %940 = vmatmul.f32.gmra.mxu0 %v395
      %v941 = vpop.f32.mrf.mxu0
      %v942 = vadd.f32 %v829, %v941
      %943 = vmatmul.f32.gmra.mxu0 %v397
      %v944 = vpop.f32.mrf.mxu0
      %v945 = vadd.f32 %v832, %v944
      %946 = vdwg.mxu0
      %947 = vmatpush.msra.mxu0 %v624
      %948 = vmatpush.msra.mxu0 %v623
      %949 = vmatpush.msra.mxu0 %v622
      %950 = vmatpush.msra.mxu0 %v621
      %951 = vmatpush.msra.mxu0 %v620
      %952 = vmatpush.msra.mxu0 %v619
      %953 = vmatpush.msra.mxu0 %v618
      %954 = vmatpush.msra.mxu0 %v617
      %955 = vmatpush.msra.mxu0 %v616
      %956 = vmatpush.msra.mxu0 %v615
      %957 = vmatpush.msra.mxu0 %v614
      %958 = vmatpush.msra.mxu0 %v613
      %959 = vmatpush.msra.mxu0 %v612
      %960 = vmatpush.msra.mxu0 %v611
      %961 = vmatpush.msra.mxu0 %v610
      %962 = vmatpush.msra.mxu0 %v609
      %963 = vmatmul.f32.gmra.mxu0 %v433
      %v964 = vpop.f32.mrf.mxu0
      %v965 = vadd.f32 %v852, %v964
      %966 = vmatmul.f32.gmra.mxu0 %v435
      %v967 = vpop.f32.mrf.mxu0
      %v968 = vadd.f32 %v855, %v967
      %969 = vmatmul.f32.gmra.mxu0 %v438
      %v970 = vpop.f32.mrf.mxu0
      %v971 = vadd.f32 %v858, %v970
      %972 = vmatmul.f32.gmra.mxu0 %v440
      %v973 = vpop.f32.mrf.mxu0
      %v974 = vadd.f32 %v861, %v973
      %975 = vmatmul.f32.gmra.mxu0 %v443
      %v976 = vpop.f32.mrf.mxu0
      %v977 = vadd.f32 %v864, %v976
      %978 = vmatmul.f32.gmra.mxu0 %v445
      %v979 = vpop.f32.mrf.mxu0
      %v980 = vadd.f32 %v867, %v979
      %981 = vmatmul.f32.gmra.mxu0 %v448
      %v982 = vpop.f32.mrf.mxu0
      %v983 = vadd.f32 %v870, %v982
      %984 = vmatmul.f32.gmra.mxu0 %v450
      %v985 = vpop.f32.mrf.mxu0
      %v986 = vadd.f32 %v873, %v985
      %987 = vmatmul.f32.gmra.mxu0 %v453
      %v988 = vpop.f32.mrf.mxu0
      %v989 = vadd.f32 %v876, %v988
      %990 = vmatmul.f32.gmra.mxu0 %v455
      %v991 = vpop.f32.mrf.mxu0
      %v992 = vadd.f32 %v879, %v991
      %993 = vmatmul.f32.gmra.mxu0 %v458
      %v994 = vpop.f32.mrf.mxu0
      %v995 = vadd.f32 %v882, %v994
      %996 = vmatmul.f32.gmra.mxu0 %v460
      %v997 = vpop.f32.mrf.mxu0
      %v998 = vadd.f32 %v885, %v997
      %999 = vmatmul.f32.gmra.mxu0 %v463
      %v1000 = vpop.f32.mrf.mxu0
      %v1001 = vadd.f32 %v888, %v1000
      %1002 = vmatmul.f32.gmra.mxu0 %v465
      %v1003 = vpop.f32.mrf.mxu0
      %v1004 = vadd.f32 %v891, %v1003
      %1005 = vmatmul.f32.gmra.mxu0 %v468
      %v1006 = vpop.f32.mrf.mxu0
      %v1007 = vadd.f32 %v894, %v1006
      %1008 = vmatmul.f32.gmra.mxu0 %v470
      %v1009 = vpop.f32.mrf.mxu0
      %v1010 = vadd.f32 %v897, %v1009
      %1011 = vmatmul.f32.gmra.mxu0 %v473
      %v1012 = vpop.f32.mrf.mxu0
      %v1013 = vadd.f32 %v900, %v1012
      %1014 = vmatmul.f32.gmra.mxu0 %v475
      %v1015 = vpop.f32.mrf.mxu0
      %v1016 = vadd.f32 %v903, %v1015
      %1017 = vmatmul.f32.gmra.mxu0 %v478
      %v1018 = vpop.f32.mrf.mxu0
      %v1019 = vadd.f32 %v906, %v1018
      %1020 = vmatmul.f32.gmra.mxu0 %v480
      %v1021 = vpop.f32.mrf.mxu0
      %v1022 = vadd.f32 %v909, %v1021
      %1023 = vmatmul.f32.gmra.mxu0 %v483
      %v1024 = vpop.f32.mrf.mxu0
      %v1025 = vadd.f32 %v912, %v1024
      %1026 = vmatmul.f32.gmra.mxu0 %v485
      %v1027 = vpop.f32.mrf.mxu0
      %v1028 = vadd.f32 %v915, %v1027
      %1029 = vmatmul.f32.gmra.mxu0 %v488
      %v1030 = vpop.f32.mrf.mxu0
      %v1031 = vadd.f32 %v918, %v1030
      %1032 = vmatmul.f32.gmra.mxu0 %v490
      %v1033 = vpop.f32.mrf.mxu0
      %v1034 = vadd.f32 %v921, %v1033
      %1035 = vmatmul.f32.gmra.mxu0 %v493
      %v1036 = vpop.f32.mrf.mxu0
      %v1037 = vadd.f32 %v924, %v1036
      %1038 = vmatmul.f32.gmra.mxu0 %v495
      %v1039 = vpop.f32.mrf.mxu0
      %v1040 = vadd.f32 %v927, %v1039
      %1041 = vmatmul.f32.gmra.mxu0 %v498
      %v1042 = vpop.f32.mrf.mxu0
      %v1043 = vadd.f32 %v930, %v1042
      %1044 = vmatmul.f32.gmra.mxu0 %v500
      %v1045 = vpop.f32.mrf.mxu0
      %v1046 = vadd.f32 %v933, %v1045
      %1047 = vmatmul.f32.gmra.mxu0 %v503
      %v1048 = vpop.f32.mrf.mxu0
      %v1049 = vadd.f32 %v936, %v1048
      %1050 = vmatmul.f32.gmra.mxu0 %v505
      %v1051 = vpop.f32.mrf.mxu0
      %v1052 = vadd.f32 %v939, %v1051
      %1053 = vmatmul.f32.gmra.mxu0 %v508
      %v1054 = vpop.f32.mrf.mxu0
      %v1055 = vadd.f32 %v942, %v1054
      %1056 = vmatmul.f32.gmra.mxu0 %v510
      %v1057 = vpop.f32.mrf.mxu0
      %v1058 = vadd.f32 %v945, %v1057
      %1059 = vdwg.mxu0
      %1060 = vmatpush.msra.mxu0 %v640
      %1061 = vmatpush.msra.mxu0 %v639
      %1062 = vmatpush.msra.mxu0 %v638
      %1063 = vmatpush.msra.mxu0 %v637
      %1064 = vmatpush.msra.mxu0 %v636
      %1065 = vmatpush.msra.mxu0 %v635
      %1066 = vmatpush.msra.mxu0 %v634
      %1067 = vmatpush.msra.mxu0 %v633
      %1068 = vmatpush.msra.mxu0 %v632
      %1069 = vmatpush.msra.mxu0 %v631
      %1070 = vmatpush.msra.mxu0 %v630
      %1071 = vmatpush.msra.mxu0 %v629
      %1072 = vmatpush.msra.mxu0 %v628
      %1073 = vmatpush.msra.mxu0 %v627
      %1074 = vmatpush.msra.mxu0 %v626
      %1075 = vmatpush.msra.mxu0 %v625
      %1076 = vmatmul.f32.gmra.mxu0 %v218
      %v1077 = vpop.f32.mrf.mxu0
      %v1078 = vadd.f32 %v965, %v1077
      %1079 = vmatmul.f32.gmra.mxu0 %v219
      %v1080 = vpop.f32.mrf.mxu0
      %v1081 = vadd.f32 %v968, %v1080
      %1082 = vmatmul.f32.gmra.mxu0 %v221
      %v1083 = vpop.f32.mrf.mxu0
      %v1084 = vadd.f32 %v971, %v1083
      %1085 = vmatmul.f32.gmra.mxu0 %v222
      %v1086 = vpop.f32.mrf.mxu0
      %v1087 = vadd.f32 %v974, %v1086
      %1088 = vmatmul.f32.gmra.mxu0 %v224
      %v1089 = vpop.f32.mrf.mxu0
      %v1090 = vadd.f32 %v977, %v1089
      %1091 = vmatmul.f32.gmra.mxu0 %v225
      %v1092 = vpop.f32.mrf.mxu0
      %v1093 = vadd.f32 %v980, %v1092
      %1094 = vmatmul.f32.gmra.mxu0 %v227
      %v1095 = vpop.f32.mrf.mxu0
      %v1096 = vadd.f32 %v983, %v1095
      %1097 = vmatmul.f32.gmra.mxu0 %v228
      %v1098 = vpop.f32.mrf.mxu0
      %v1099 = vadd.f32 %v986, %v1098
      %1100 = vmatmul.f32.gmra.mxu0 %v230
      %v1101 = vpop.f32.mrf.mxu0
      %v1102 = vadd.f32 %v989, %v1101
      %1103 = vmatmul.f32.gmra.mxu0 %v231
      %v1104 = vpop.f32.mrf.mxu0
      %v1105 = vadd.f32 %v992, %v1104
      %1106 = vmatmul.f32.gmra.mxu0 %v233
      %v1107 = vpop.f32.mrf.mxu0
      %v1108 = vadd.f32 %v995, %v1107
      %1109 = vmatmul.f32.gmra.mxu0 %v234
      %v1110 = vpop.f32.mrf.mxu0
      %v1111 = vadd.f32 %v998, %v1110
      %1112 = vmatmul.f32.gmra.mxu0 %v236
      %v1113 = vpop.f32.mrf.mxu0
      %v1114 = vadd.f32 %v1001, %v1113
      %1115 = vmatmul.f32.gmra.mxu0 %v237
      %v1116 = vpop.f32.mrf.mxu0
      %v1117 = vadd.f32 %v1004, %v1116
      %1118 = vmatmul.f32.gmra.mxu0 %v239
      %v1119 = vpop.f32.mrf.mxu0
      %v1120 = vadd.f32 %v1007, %v1119
      %1121 = vmatmul.f32.gmra.mxu0 %v240
      %v1122 = vpop.f32.mrf.mxu0
      %v1123 = vadd.f32 %v1010, %v1122
      %1124 = vmatmul.f32.gmra.mxu0 %v242
      %v1125 = vpop.f32.mrf.mxu0
      %v1126 = vadd.f32 %v1013, %v1125
      %1127 = vmatmul.f32.gmra.mxu0 %v243
      %v1128 = vpop.f32.mrf.mxu0
      %v1129 = vadd.f32 %v1016, %v1128
      %1130 = vmatmul.f32.gmra.mxu0 %v245
      %v1131 = vpop.f32.mrf.mxu0
      %v1132 = vadd.f32 %v1019, %v1131
      %1133 = vmatmul.f32.gmra.mxu0 %v246
      %v1134 = vpop.f32.mrf.mxu0
      %v1135 = vadd.f32 %v1022, %v1134
      %1136 = vmatmul.f32.gmra.mxu0 %v248
      %v1137 = vpop.f32.mrf.mxu0
      %v1138 = vadd.f32 %v1025, %v1137
      %1139 = vmatmul.f32.gmra.mxu0 %v249
      %v1140 = vpop.f32.mrf.mxu0
      %v1141 = vadd.f32 %v1028, %v1140
      %1142 = vmatmul.f32.gmra.mxu0 %v251
      %v1143 = vpop.f32.mrf.mxu0
      %v1144 = vadd.f32 %v1031, %v1143
      %1145 = vmatmul.f32.gmra.mxu0 %v252
      %v1146 = vpop.f32.mrf.mxu0
      %v1147 = vadd.f32 %v1034, %v1146
      %1148 = vmatmul.f32.gmra.mxu0 %v254
      %v1149 = vpop.f32.mrf.mxu0
      %v1150 = vadd.f32 %v1037, %v1149
      %1151 = vmatmul.f32.gmra.mxu0 %v255
      %v1152 = vpop.f32.mrf.mxu0
      %v1153 = vadd.f32 %v1040, %v1152
      %1154 = vmatmul.f32.gmra.mxu0 %v257
      %v1155 = vpop.f32.mrf.mxu0
      %v1156 = vadd.f32 %v1043, %v1155
      %1157 = vmatmul.f32.gmra.mxu0 %v258
      %v1158 = vpop.f32.mrf.mxu0
      %v1159 = vadd.f32 %v1046, %v1158
      %1160 = vmatmul.f32.gmra.mxu0 %v260
      %v1161 = vpop.f32.mrf.mxu0
      %v1162 = vadd.f32 %v1049, %v1161
      %1163 = vmatmul.f32.gmra.mxu0 %v261
      %v1164 = vpop.f32.mrf.mxu0
      %v1165 = vadd.f32 %v1052, %v1164
      %1166 = vmatmul.f32.gmra.mxu0 %v263
      %v1167 = vpop.f32.mrf.mxu0
      %v1168 = vadd.f32 %v1055, %v1167
      %1169 = vmatmul.f32.gmra.mxu0 %v264
      %v1170 = vpop.f32.mrf.mxu0
      %v1171 = vadd.f32 %v1058, %v1170
      %1172 = vdwg.mxu0
      %1173 = vmatpush.msra.mxu0 %v656
      %1174 = vmatpush.msra.mxu0 %v655
      %1175 = vmatpush.msra.mxu0 %v654
      %1176 = vmatpush.msra.mxu0 %v653
      %1177 = vmatpush.msra.mxu0 %v652
      %1178 = vmatpush.msra.mxu0 %v651
      %1179 = vmatpush.msra.mxu0 %v650
      %1180 = vmatpush.msra.mxu0 %v649
      %1181 = vmatpush.msra.mxu0 %v648
      %1182 = vmatpush.msra.mxu0 %v647
      %1183 = vmatpush.msra.mxu0 %v646
      %1184 = vmatpush.msra.mxu0 %v645
      %1185 = vmatpush.msra.mxu0 %v644
      %1186 = vmatpush.msra.mxu0 %v643
      %1187 = vmatpush.msra.mxu0 %v642
      %1188 = vmatpush.msra.mxu0 %v641
      %1189 = vmatmul.f32.gmra.mxu0 %v325
      %v1190 = vpop.f32.mrf.mxu0
      %v1191 = vadd.f32 %v1078, %v1190
      %1192 = vmatmul.f32.gmra.mxu0 %v327
      %v1193 = vpop.f32.mrf.mxu0
      %v1194 = vadd.f32 %v1081, %v1193
      %1195 = vmatmul.f32.gmra.mxu0 %v330
      %v1196 = vpop.f32.mrf.mxu0
      %v1197 = vadd.f32 %v1084, %v1196
      %1198 = vmatmul.f32.gmra.mxu0 %v332
      %v1199 = vpop.f32.mrf.mxu0
      %v1200 = vadd.f32 %v1087, %v1199
      %1201 = vmatmul.f32.gmra.mxu0 %v335
      %v1202 = vpop.f32.mrf.mxu0
      %v1203 = vadd.f32 %v1090, %v1202
      %1204 = vmatmul.f32.gmra.mxu0 %v337
      %v1205 = vpop.f32.mrf.mxu0
      %v1206 = vadd.f32 %v1093, %v1205
      %1207 = vmatmul.f32.gmra.mxu0 %v340
      %v1208 = vpop.f32.mrf.mxu0
      %v1209 = vadd.f32 %v1096, %v1208
      %1210 = vmatmul.f32.gmra.mxu0 %v342
      %v1211 = vpop.f32.mrf.mxu0
      %v1212 = vadd.f32 %v1099, %v1211
      %1213 = vmatmul.f32.gmra.mxu0 %v345
      %v1214 = vpop.f32.mrf.mxu0
      %v1215 = vadd.f32 %v1102, %v1214
      %1216 = vmatmul.f32.gmra.mxu0 %v347
      %v1217 = vpop.f32.mrf.mxu0
      %v1218 = vadd.f32 %v1105, %v1217
      %1219 = vmatmul.f32.gmra.mxu0 %v350
      %v1220 = vpop.f32.mrf.mxu0
      %v1221 = vadd.f32 %v1108, %v1220
      %1222 = vmatmul.f32.gmra.mxu0 %v352
      %v1223 = vpop.f32.mrf.mxu0
      %v1224 = vadd.f32 %v1111, %v1223
      %1225 = vmatmul.f32.gmra.mxu0 %v355
      %v1226 = vpop.f32.mrf.mxu0
      %v1227 = vadd.f32 %v1114, %v1226
      %1228 = vmatmul.f32.gmra.mxu0 %v357
      %v1229 = vpop.f32.mrf.mxu0
      %v1230 = vadd.f32 %v1117, %v1229
      %1231 = vmatmul.f32.gmra.mxu0 %v360
      %v1232 = vpop.f32.mrf.mxu0
      %v1233 = vadd.f32 %v1120, %v1232
      %1234 = vmatmul.f32.gmra.mxu0 %v362
      %v1235 = vpop.f32.mrf.mxu0
      %v1236 = vadd.f32 %v1123, %v1235
      %1237 = vmatmul.f32.gmra.mxu0 %v365
      %v1238 = vpop.f32.mrf.mxu0
      %v1239 = vadd.f32 %v1126, %v1238
      %1240 = vmatmul.f32.gmra.mxu0 %v367
      %v1241 = vpop.f32.mrf.mxu0
      %v1242 = vadd.f32 %v1129, %v1241
      %1243 = vmatmul.f32.gmra.mxu0 %v370
      %v1244 = vpop.f32.mrf.mxu0
      %v1245 = vadd.f32 %v1132, %v1244
      %1246 = vmatmul.f32.gmra.mxu0 %v372
      %v1247 = vpop.f32.mrf.mxu0
      %v1248 = vadd.f32 %v1135, %v1247
      %1249 = vmatmul.f32.gmra.mxu0 %v375
      %v1250 = vpop.f32.mrf.mxu0
      %v1251 = vadd.f32 %v1138, %v1250
      %1252 = vmatmul.f32.gmra.mxu0 %v377
      %v1253 = vpop.f32.mrf.mxu0
      %v1254 = vadd.f32 %v1141, %v1253
      %1255 = vmatmul.f32.gmra.mxu0 %v380
      %v1256 = vpop.f32.mrf.mxu0
      %v1257 = vadd.f32 %v1144, %v1256
      %1258 = vmatmul.f32.gmra.mxu0 %v382
      %v1259 = vpop.f32.mrf.mxu0
      %v1260 = vadd.f32 %v1147, %v1259
      %1261 = vmatmul.f32.gmra.mxu0 %v385
      %v1262 = vpop.f32.mrf.mxu0
      %v1263 = vadd.f32 %v1150, %v1262
      %1264 = vmatmul.f32.gmra.mxu0 %v387
      %v1265 = vpop.f32.mrf.mxu0
      %v1266 = vadd.f32 %v1153, %v1265
      %1267 = vmatmul.f32.gmra.mxu0 %v390
      %v1268 = vpop.f32.mrf.mxu0
      %v1269 = vadd.f32 %v1156, %v1268
      %1270 = vmatmul.f32.gmra.mxu0 %v392
      %v1271 = vpop.f32.mrf.mxu0
      %v1272 = vadd.f32 %v1159, %v1271
      %1273 = vmatmul.f32.gmra.mxu0 %v395
      %v1274 = vpop.f32.mrf.mxu0
      %v1275 = vadd.f32 %v1162, %v1274
      %1276 = vmatmul.f32.gmra.mxu0 %v397
      %v1277 = vpop.f32.mrf.mxu0
      %v1278 = vadd.f32 %v1165, %v1277
      %1279 = vmatmul.f32.gmra.mxu0 %v548
      %v1280 = vpop.f32.mrf.mxu0
      %v1281 = vadd.f32 %v1168, %v1280
      %1282 = vmatmul.f32.gmra.mxu0 %v550
      %v1283 = vpop.f32.mrf.mxu0
      %v1284 = vadd.f32 %v1171, %v1283
      %1285 = vdwg.mxu0
      %1286 = vmatpush.msra.mxu0 %v672
      %1287 = vmatpush.msra.mxu0 %v671
      %1288 = vmatpush.msra.mxu0 %v670
      %1289 = vmatpush.msra.mxu0 %v669
      %1290 = vmatpush.msra.mxu0 %v668
      %1291 = vmatpush.msra.mxu0 %v667
      %1292 = vmatpush.msra.mxu0 %v666
      %1293 = vmatpush.msra.mxu0 %v665
      %1294 = vmatpush.msra.mxu0 %v664
      %1295 = vmatpush.msra.mxu0 %v663
      %1296 = vmatpush.msra.mxu0 %v662
      %1297 = vmatpush.msra.mxu0 %v661
      %1298 = vmatpush.msra.mxu0 %v660
      %1299 = vmatpush.msra.mxu0 %v659
      %1300 = vmatpush.msra.mxu0 %v658
      %1301 = vmatpush.msra.mxu0 %v657
      %1302 = vmatmul.f32.gmra.mxu0 %v438
      %v1303 = vpop.f32.mrf.mxu0
      %v1304 = vadd.f32 %v1191, %v1303
      %1305 = vmatmul.f32.gmra.mxu0 %v440
      %v1306 = vpop.f32.mrf.mxu0
      %v1307 = vadd.f32 %v1194, %v1306
      %1308 = vmatmul.f32.gmra.mxu0 %v443
      %v1309 = vpop.f32.mrf.mxu0
      %v1310 = vadd.f32 %v1197, %v1309
      %1311 = vmatmul.f32.gmra.mxu0 %v445
      %v1312 = vpop.f32.mrf.mxu0
      %v1313 = vadd.f32 %v1200, %v1312
      %1314 = vmatmul.f32.gmra.mxu0 %v448
      %v1315 = vpop.f32.mrf.mxu0
      %v1316 = vadd.f32 %v1203, %v1315
      %1317 = vmatmul.f32.gmra.mxu0 %v450
      %v1318 = vpop.f32.mrf.mxu0
      %v1319 = vadd.f32 %v1206, %v1318
      %1320 = vmatmul.f32.gmra.mxu0 %v453
      %v1321 = vpop.f32.mrf.mxu0
      %v1322 = vadd.f32 %v1209, %v1321
      %1323 = vmatmul.f32.gmra.mxu0 %v455
      %v1324 = vpop.f32.mrf.mxu0
      %v1325 = vadd.f32 %v1212, %v1324
      %1326 = vmatmul.f32.gmra.mxu0 %v458
      %v1327 = vpop.f32.mrf.mxu0
      %v1328 = vadd.f32 %v1215, %v1327
      %1329 = vmatmul.f32.gmra.mxu0 %v460
      %v1330 = vpop.f32.mrf.mxu0
      %v1331 = vadd.f32 %v1218, %v1330
      %1332 = vmatmul.f32.gmra.mxu0 %v463
      %v1333 = vpop.f32.mrf.mxu0
      %v1334 = vadd.f32 %v1221, %v1333
      %1335 = vmatmul.f32.gmra.mxu0 %v465
      %v1336 = vpop.f32.mrf.mxu0
      %v1337 = vadd.f32 %v1224, %v1336
      %1338 = vmatmul.f32.gmra.mxu0 %v468
      %v1339 = vpop.f32.mrf.mxu0
      %v1340 = vadd.f32 %v1227, %v1339
      %1341 = vmatmul.f32.gmra.mxu0 %v470
      %v1342 = vpop.f32.mrf.mxu0
      %v1343 = vadd.f32 %v1230, %v1342
      %1344 = vmatmul.f32.gmra.mxu0 %v473
      %v1345 = vpop.f32.mrf.mxu0
      %v1346 = vadd.f32 %v1233, %v1345
      %1347 = vmatmul.f32.gmra.mxu0 %v475
      %v1348 = vpop.f32.mrf.mxu0
      %v1349 = vadd.f32 %v1236, %v1348
      %1350 = vmatmul.f32.gmra.mxu0 %v478
      %v1351 = vpop.f32.mrf.mxu0
      %v1352 = vadd.f32 %v1239, %v1351
      %1353 = vmatmul.f32.gmra.mxu0 %v480
      %v1354 = vpop.f32.mrf.mxu0
      %v1355 = vadd.f32 %v1242, %v1354
      %1356 = vmatmul.f32.gmra.mxu0 %v483
      %v1357 = vpop.f32.mrf.mxu0
      %v1358 = vadd.f32 %v1245, %v1357
      %1359 = vmatmul.f32.gmra.mxu0 %v485
      %v1360 = vpop.f32.mrf.mxu0
      %v1361 = vadd.f32 %v1248, %v1360
      %1362 = vmatmul.f32.gmra.mxu0 %v488
      %v1363 = vpop.f32.mrf.mxu0
      %v1364 = vadd.f32 %v1251, %v1363
      %1365 = vmatmul.f32.gmra.mxu0 %v490
      %v1366 = vpop.f32.mrf.mxu0
      %v1367 = vadd.f32 %v1254, %v1366
      %1368 = vmatmul.f32.gmra.mxu0 %v493
      %v1369 = vpop.f32.mrf.mxu0
      %v1370 = vadd.f32 %v1257, %v1369
      %1371 = vmatmul.f32.gmra.mxu0 %v495
      %v1372 = vpop.f32.mrf.mxu0
      %v1373 = vadd.f32 %v1260, %v1372
      %1374 = vmatmul.f32.gmra.mxu0 %v498
      %v1375 = vpop.f32.mrf.mxu0
      %v1376 = vadd.f32 %v1263, %v1375
      %1377 = vmatmul.f32.gmra.mxu0 %v500
      %v1378 = vpop.f32.mrf.mxu0
      %v1379 = vadd.f32 %v1266, %v1378
      %1380 = vmatmul.f32.gmra.mxu0 %v503
      %v1381 = vpop.f32.mrf.mxu0
      %v1382 = vadd.f32 %v1269, %v1381
      %1383 = vmatmul.f32.gmra.mxu0 %v505
      %v1384 = vpop.f32.mrf.mxu0
      %v1385 = vadd.f32 %v1272, %v1384
      %1386 = vmatmul.f32.gmra.mxu0 %v508
      %v1387 = vpop.f32.mrf.mxu0
      %v1388 = vadd.f32 %v1275, %v1387
      %1389 = vmatmul.f32.gmra.mxu0 %v510
      %v1390 = vpop.f32.mrf.mxu0
      %v1391 = vadd.f32 %v1278, %v1390
      %1392 = vmatmul.f32.gmra.mxu0 %v555
      %v1393 = vpop.f32.mrf.mxu0
      %v1394 = vadd.f32 %v1281, %v1393
      %1395 = vmatmul.f32.gmra.mxu0 %v557
      %v1396 = vpop.f32.mrf.mxu0
      %v1397 = vadd.f32 %v1284, %v1396
      %1398 = vdwg.mxu0
      %1399 = vmatpush.msra.mxu0 %v688
      %1400 = vmatpush.msra.mxu0 %v687
      %1401 = vmatpush.msra.mxu0 %v686
      %1402 = vmatpush.msra.mxu0 %v685
      %1403 = vmatpush.msra.mxu0 %v684
      %1404 = vmatpush.msra.mxu0 %v683
      %1405 = vmatpush.msra.mxu0 %v682
      %1406 = vmatpush.msra.mxu0 %v681
      %1407 = vmatpush.msra.mxu0 %v680
      %1408 = vmatpush.msra.mxu0 %v679
      %1409 = vmatpush.msra.mxu0 %v678
      %1410 = vmatpush.msra.mxu0 %v677
      %1411 = vmatpush.msra.mxu0 %v676
      %1412 = vmatpush.msra.mxu0 %v675
      %1413 = vmatpush.msra.mxu0 %v674
      %1414 = vmatpush.msra.mxu0 %v673
      %1415 = vmatmul.f32.gmra.mxu0 %v221
      %v1416 = vpop.f32.mrf.mxu0
      %v1417 = vadd.f32 %v1304, %v1416
      %1418 = vmatmul.f32.gmra.mxu0 %v222
      %v1419 = vpop.f32.mrf.mxu0
      %v1420 = vadd.f32 %v1307, %v1419
      %1421 = vmatmul.f32.gmra.mxu0 %v224
      %v1422 = vpop.f32.mrf.mxu0
      %v1423 = vadd.f32 %v1310, %v1422
      %1424 = vmatmul.f32.gmra.mxu0 %v225
      %v1425 = vpop.f32.mrf.mxu0
      %v1426 = vadd.f32 %v1313, %v1425
      %1427 = vmatmul.f32.gmra.mxu0 %v227
      %v1428 = vpop.f32.mrf.mxu0
      %v1429 = vadd.f32 %v1316, %v1428
      %1430 = vmatmul.f32.gmra.mxu0 %v228
      %v1431 = vpop.f32.mrf.mxu0
      %v1432 = vadd.f32 %v1319, %v1431
      %1433 = vmatmul.f32.gmra.mxu0 %v230
      %v1434 = vpop.f32.mrf.mxu0
      %v1435 = vadd.f32 %v1322, %v1434
      %1436 = vmatmul.f32.gmra.mxu0 %v231
      %v1437 = vpop.f32.mrf.mxu0
      %v1438 = vadd.f32 %v1325, %v1437
      %1439 = vmatmul.f32.gmra.mxu0 %v233
      %v1440 = vpop.f32.mrf.mxu0
      %v1441 = vadd.f32 %v1328, %v1440
      %1442 = vmatmul.f32.gmra.mxu0 %v234
      %v1443 = vpop.f32.mrf.mxu0
      %v1444 = vadd.f32 %v1331, %v1443
      %1445 = vmatmul.f32.gmra.mxu0 %v236
      %v1446 = vpop.f32.mrf.mxu0
      %v1447 = vadd.f32 %v1334, %v1446
      %1448 = vmatmul.f32.gmra.mxu0 %v237
      %v1449 = vpop.f32.mrf.mxu0
      %v1450 = vadd.f32 %v1337, %v1449
      %1451 = vmatmul.f32.gmra.mxu0 %v239
      %v1452 = vpop.f32.mrf.mxu0
      %v1453 = vadd.f32 %v1340, %v1452
      %1454 = vmatmul.f32.gmra.mxu0 %v240
      %v1455 = vpop.f32.mrf.mxu0
      %v1456 = vadd.f32 %v1343, %v1455
      %1457 = vmatmul.f32.gmra.mxu0 %v242
      %v1458 = vpop.f32.mrf.mxu0
      %v1459 = vadd.f32 %v1346, %v1458
      %1460 = vmatmul.f32.gmra.mxu0 %v243
      %v1461 = vpop.f32.mrf.mxu0
      %v1462 = vadd.f32 %v1349, %v1461
      %1463 = vmatmul.f32.gmra.mxu0 %v245
      %v1464 = vpop.f32.mrf.mxu0
      %v1465 = vadd.f32 %v1352, %v1464
      %1466 = vmatmul.f32.gmra.mxu0 %v246
      %v1467 = vpop.f32.mrf.mxu0
      %v1468 = vadd.f32 %v1355, %v1467
      %1469 = vmatmul.f32.gmra.mxu0 %v248
      %v1470 = vpop.f32.mrf.mxu0
      %v1471 = vadd.f32 %v1358, %v1470
      %1472 = vmatmul.f32.gmra.mxu0 %v249
      %v1473 = vpop.f32.mrf.mxu0
      %v1474 = vadd.f32 %v1361, %v1473
      %1475 = vmatmul.f32.gmra.mxu0 %v251
      %v1476 = vpop.f32.mrf.mxu0
      %v1477 = vadd.f32 %v1364, %v1476
      %1478 = vmatmul.f32.gmra.mxu0 %v252
      %v1479 = vpop.f32.mrf.mxu0
      %v1480 = vadd.f32 %v1367, %v1479
      %1481 = vmatmul.f32.gmra.mxu0 %v254
      %v1482 = vpop.f32.mrf.mxu0
      %v1483 = vadd.f32 %v1370, %v1482
      %1484 = vmatmul.f32.gmra.mxu0 %v255
      %v1485 = vpop.f32.mrf.mxu0
      %v1486 = vadd.f32 %v1373, %v1485
      %1487 = vmatmul.f32.gmra.mxu0 %v257
      %v1488 = vpop.f32.mrf.mxu0
      %v1489 = vadd.f32 %v1376, %v1488
      %1490 = vmatmul.f32.gmra.mxu0 %v258
      %v1491 = vpop.f32.mrf.mxu0
      %v1492 = vadd.f32 %v1379, %v1491
      %1493 = vmatmul.f32.gmra.mxu0 %v260
      %v1494 = vpop.f32.mrf.mxu0
      %v1495 = vadd.f32 %v1382, %v1494
      %1496 = vmatmul.f32.gmra.mxu0 %v261
      %v1497 = vpop.f32.mrf.mxu0
      %v1498 = vadd.f32 %v1385, %v1497
      %1499 = vmatmul.f32.gmra.mxu0 %v263
      %v1500 = vpop.f32.mrf.mxu0
      %v1501 = vadd.f32 %v1388, %v1500
      %1502 = vmatmul.f32.gmra.mxu0 %v264
      %v1503 = vpop.f32.mrf.mxu0
      %v1504 = vadd.f32 %v1391, %v1503
      %1505 = vmatmul.f32.gmra.mxu0 %v266
      %v1506 = vpop.f32.mrf.mxu0
      %v1507 = vadd.f32 %v1394, %v1506
      %1508 = vmatmul.f32.gmra.mxu0 %v267
      %v1509 = vpop.f32.mrf.mxu0
      %v1510 = vadd.f32 %v1397, %v1509
      %1511 = vdwg.mxu0
      %1512 = vmatpush.msra.mxu0 %v704
      %1513 = vmatpush.msra.mxu0 %v703
      %1514 = vmatpush.msra.mxu0 %v702
      %1515 = vmatpush.msra.mxu0 %v701
      %1516 = vmatpush.msra.mxu0 %v700
      %1517 = vmatpush.msra.mxu0 %v699
      %1518 = vmatpush.msra.mxu0 %v698
      %1519 = vmatpush.msra.mxu0 %v697
      %1520 = vmatpush.msra.mxu0 %v696
      %1521 = vmatpush.msra.mxu0 %v695
      %1522 = vmatpush.msra.mxu0 %v694
      %1523 = vmatpush.msra.mxu0 %v693
      %1524 = vmatpush.msra.mxu0 %v692
      %1525 = vmatpush.msra.mxu0 %v691
      %1526 = vmatpush.msra.mxu0 %v690
      %1527 = vmatpush.msra.mxu0 %v689
      %1528 = vmatmul.f32.gmra.mxu0 %v330
      %v1529 = vpop.f32.mrf.mxu0
      %v1530 = vadd.f32 %v1417, %v1529
      %1531 = vmatmul.f32.gmra.mxu0 %v332
      %v1532 = vpop.f32.mrf.mxu0
      %v1533 = vadd.f32 %v1420, %v1532
      %1534 = vmatmul.f32.gmra.mxu0 %v335
      %v1535 = vpop.f32.mrf.mxu0
      %v1536 = vadd.f32 %v1423, %v1535
      %1537 = vmatmul.f32.gmra.mxu0 %v337
      %v1538 = vpop.f32.mrf.mxu0
      %v1539 = vadd.f32 %v1426, %v1538
      %1540 = vmatmul.f32.gmra.mxu0 %v340
      %v1541 = vpop.f32.mrf.mxu0
      %v1542 = vadd.f32 %v1429, %v1541
      %1543 = vmatmul.f32.gmra.mxu0 %v342
      %v1544 = vpop.f32.mrf.mxu0
      %v1545 = vadd.f32 %v1432, %v1544
      %1546 = vmatmul.f32.gmra.mxu0 %v345
      %v1547 = vpop.f32.mrf.mxu0
      %v1548 = vadd.f32 %v1435, %v1547
      %1549 = vmatmul.f32.gmra.mxu0 %v347
      %v1550 = vpop.f32.mrf.mxu0
      %v1551 = vadd.f32 %v1438, %v1550
      %1552 = vmatmul.f32.gmra.mxu0 %v350
      %v1553 = vpop.f32.mrf.mxu0
      %v1554 = vadd.f32 %v1441, %v1553
      %1555 = vmatmul.f32.gmra.mxu0 %v352
      %v1556 = vpop.f32.mrf.mxu0
      %v1557 = vadd.f32 %v1444, %v1556
      %1558 = vmatmul.f32.gmra.mxu0 %v355
      %v1559 = vpop.f32.mrf.mxu0
      %v1560 = vadd.f32 %v1447, %v1559
      %1561 = vmatmul.f32.gmra.mxu0 %v357
      %v1562 = vpop.f32.mrf.mxu0
      %v1563 = vadd.f32 %v1450, %v1562
      %1564 = vmatmul.f32.gmra.mxu0 %v360
      %v1565 = vpop.f32.mrf.mxu0
      %v1566 = vadd.f32 %v1453, %v1565
      %1567 = vmatmul.f32.gmra.mxu0 %v362
      %v1568 = vpop.f32.mrf.mxu0
      %v1569 = vadd.f32 %v1456, %v1568
      %1570 = vmatmul.f32.gmra.mxu0 %v365
      %v1571 = vpop.f32.mrf.mxu0
      %v1572 = vadd.f32 %v1459, %v1571
      %1573 = vmatmul.f32.gmra.mxu0 %v367
      %v1574 = vpop.f32.mrf.mxu0
      %v1575 = vadd.f32 %v1462, %v1574
      %1576 = vmatmul.f32.gmra.mxu0 %v370
      %v1577 = vpop.f32.mrf.mxu0
      %v1578 = vadd.f32 %v1465, %v1577
      %1579 = vmatmul.f32.gmra.mxu0 %v372
      %v1580 = vpop.f32.mrf.mxu0
      %v1581 = vadd.f32 %v1468, %v1580
      %1582 = vmatmul.f32.gmra.mxu0 %v375
      %v1583 = vpop.f32.mrf.mxu0
      %v1584 = vadd.f32 %v1471, %v1583
      %1585 = vmatmul.f32.gmra.mxu0 %v377
      %v1586 = vpop.f32.mrf.mxu0
      %v1587 = vadd.f32 %v1474, %v1586
      %1588 = vmatmul.f32.gmra.mxu0 %v380
      %v1589 = vpop.f32.mrf.mxu0
      %v1590 = vadd.f32 %v1477, %v1589
      %1591 = vmatmul.f32.gmra.mxu0 %v382
      %v1592 = vpop.f32.mrf.mxu0
      %v1593 = vadd.f32 %v1480, %v1592
      %1594 = vmatmul.f32.gmra.mxu0 %v385
      %v1595 = vpop.f32.mrf.mxu0
      %v1596 = vadd.f32 %v1483, %v1595
      %1597 = vmatmul.f32.gmra.mxu0 %v387
      %v1598 = vpop.f32.mrf.mxu0
      %v1599 = vadd.f32 %v1486, %v1598
      %1600 = vmatmul.f32.gmra.mxu0 %v390
      %v1601 = vpop.f32.mrf.mxu0
      %v1602 = vadd.f32 %v1489, %v1601
      %1603 = vmatmul.f32.gmra.mxu0 %v392
      %v1604 = vpop.f32.mrf.mxu0
      %v1605 = vadd.f32 %v1492, %v1604
      %1606 = vmatmul.f32.gmra.mxu0 %v395
      %v1607 = vpop.f32.mrf.mxu0
      %v1608 = vadd.f32 %v1495, %v1607
      %1609 = vmatmul.f32.gmra.mxu0 %v397
      %v1610 = vpop.f32.mrf.mxu0
      %v1611 = vadd.f32 %v1498, %v1610
      %1612 = vmatmul.f32.gmra.mxu0 %v548
      %v1613 = vpop.f32.mrf.mxu0
      %v1614 = vadd.f32 %v1501, %v1613
      %1615 = vmatmul.f32.gmra.mxu0 %v550
      %v1616 = vpop.f32.mrf.mxu0
      %v1617 = vadd.f32 %v1504, %v1616
      %1618 = vmatmul.f32.gmra.mxu0 %v565
      %v1619 = vpop.f32.mrf.mxu0
      %v1620 = vadd.f32 %v1507, %v1619
      %1621 = vmatmul.f32.gmra.mxu0 %v567
      %v1622 = vpop.f32.mrf.mxu0
      %v1623 = vadd.f32 %v1510, %v1622
      %1624 = vdwg.mxu0
      %1625 = vmatpush.msra.mxu0 %v720
      %1626 = vmatpush.msra.mxu0 %v719
      %1627 = vmatpush.msra.mxu0 %v718
      %1628 = vmatpush.msra.mxu0 %v717
      %1629 = vmatpush.msra.mxu0 %v716
      %1630 = vmatpush.msra.mxu0 %v715
      %1631 = vmatpush.msra.mxu0 %v714
      %1632 = vmatpush.msra.mxu0 %v713
      %1633 = vmatpush.msra.mxu0 %v712
      %1634 = vmatpush.msra.mxu0 %v711
      %1635 = vmatpush.msra.mxu0 %v710
      %1636 = vmatpush.msra.mxu0 %v709
      %1637 = vmatpush.msra.mxu0 %v708
      %1638 = vmatpush.msra.mxu0 %v707
      %1639 = vmatpush.msra.mxu0 %v706
      %1640 = vmatpush.msra.mxu0 %v705
      %1641 = vmatmul.f32.gmra.mxu0 %v443
      %v1642 = vpop.f32.mrf.mxu0
      %v1643 = vadd.f32 %v1530, %v1642
      %1644 = vmatmul.f32.gmra.mxu0 %v445
      %v1645 = vpop.f32.mrf.mxu0
      %v1646 = vadd.f32 %v1533, %v1645
      %1647 = vmatmul.f32.gmra.mxu0 %v448
      %v1648 = vpop.f32.mrf.mxu0
      %v1649 = vadd.f32 %v1536, %v1648
      %1650 = vmatmul.f32.gmra.mxu0 %v450
      %v1651 = vpop.f32.mrf.mxu0
      %v1652 = vadd.f32 %v1539, %v1651
      %1653 = vmatmul.f32.gmra.mxu0 %v453
      %v1654 = vpop.f32.mrf.mxu0
      %v1655 = vadd.f32 %v1542, %v1654
      %1656 = vmatmul.f32.gmra.mxu0 %v455
      %v1657 = vpop.f32.mrf.mxu0
      %v1658 = vadd.f32 %v1545, %v1657
      %1659 = vmatmul.f32.gmra.mxu0 %v458
      %v1660 = vpop.f32.mrf.mxu0
      %v1661 = vadd.f32 %v1548, %v1660
      %1662 = vmatmul.f32.gmra.mxu0 %v460
      %v1663 = vpop.f32.mrf.mxu0
      %v1664 = vadd.f32 %v1551, %v1663
      %1665 = vmatmul.f32.gmra.mxu0 %v463
      %v1666 = vpop.f32.mrf.mxu0
      %v1667 = vadd.f32 %v1554, %v1666
      %1668 = vmatmul.f32.gmra.mxu0 %v465
      %v1669 = vpop.f32.mrf.mxu0
      %v1670 = vadd.f32 %v1557, %v1669
      %1671 = vmatmul.f32.gmra.mxu0 %v468
      %v1672 = vpop.f32.mrf.mxu0
      %v1673 = vadd.f32 %v1560, %v1672
      %1674 = vmatmul.f32.gmra.mxu0 %v470
      %v1675 = vpop.f32.mrf.mxu0
      %v1676 = vadd.f32 %v1563, %v1675
      %1677 = vmatmul.f32.gmra.mxu0 %v473
      %v1678 = vpop.f32.mrf.mxu0
      %v1679 = vadd.f32 %v1566, %v1678
      %1680 = vmatmul.f32.gmra.mxu0 %v475
      %v1681 = vpop.f32.mrf.mxu0
      %v1682 = vadd.f32 %v1569, %v1681
      %1683 = vmatmul.f32.gmra.mxu0 %v478
      %v1684 = vpop.f32.mrf.mxu0
      %v1685 = vadd.f32 %v1572, %v1684
      %1686 = vmatmul.f32.gmra.mxu0 %v480
      %v1687 = vpop.f32.mrf.mxu0
      %v1688 = vadd.f32 %v1575, %v1687
      %1689 = vmatmul.f32.gmra.mxu0 %v483
      %v1690 = vpop.f32.mrf.mxu0
      %v1691 = vadd.f32 %v1578, %v1690
      %1692 = vmatmul.f32.gmra.mxu0 %v485
      %v1693 = vpop.f32.mrf.mxu0
      %v1694 = vadd.f32 %v1581, %v1693
      %1695 = vmatmul.f32.gmra.mxu0 %v488
      %v1696 = vpop.f32.mrf.mxu0
      %v1697 = vadd.f32 %v1584, %v1696
      %1698 = vmatmul.f32.gmra.mxu0 %v490
      %v1699 = vpop.f32.mrf.mxu0
      %v1700 = vadd.f32 %v1587, %v1699
      %1701 = vmatmul.f32.gmra.mxu0 %v493
      %v1702 = vpop.f32.mrf.mxu0
      %v1703 = vadd.f32 %v1590, %v1702
      %1704 = vmatmul.f32.gmra.mxu0 %v495
      %v1705 = vpop.f32.mrf.mxu0
      %v1706 = vadd.f32 %v1593, %v1705
      %1707 = vmatmul.f32.gmra.mxu0 %v498
      %v1708 = vpop.f32.mrf.mxu0
      %v1709 = vadd.f32 %v1596, %v1708
      %1710 = vmatmul.f32.gmra.mxu0 %v500
      %v1711 = vpop.f32.mrf.mxu0
      %v1712 = vadd.f32 %v1599, %v1711
      %1713 = vmatmul.f32.gmra.mxu0 %v503
      %v1714 = vpop.f32.mrf.mxu0
      %v1715 = vadd.f32 %v1602, %v1714
      %1716 = vmatmul.f32.gmra.mxu0 %v505
      %v1717 = vpop.f32.mrf.mxu0
      %v1718 = vadd.f32 %v1605, %v1717
      %1719 = vmatmul.f32.gmra.mxu0 %v508
      %v1720 = vpop.f32.mrf.mxu0
      %v1721 = vadd.f32 %v1608, %v1720
      %1722 = vmatmul.f32.gmra.mxu0 %v510
      %v1723 = vpop.f32.mrf.mxu0
      %v1724 = vadd.f32 %v1611, %v1723
      %1725 = vmatmul.f32.gmra.mxu0 %v555
      %v1726 = vpop.f32.mrf.mxu0
      %v1727 = vadd.f32 %v1614, %v1726
      %1728 = vmatmul.f32.gmra.mxu0 %v557
      %v1729 = vpop.f32.mrf.mxu0
      %v1730 = vadd.f32 %v1617, %v1729
      %1731 = vmatmul.f32.gmra.mxu0 %v572
      %v1732 = vpop.f32.mrf.mxu0
      %v1733 = vadd.f32 %v1620, %v1732
      %1734 = vmatmul.f32.gmra.mxu0 %v574
      %v1735 = vpop.f32.mrf.mxu0
      %v1736 = vadd.f32 %v1623, %v1735
      %1737 = vdwg.mxu0
      %1738 = vst [vmem:[%s208] sm:$0xff] %v1643
      %1739 = vst [vmem:[%s208 + $0x8] sm:$0xff] %v1646
      %1740 = vst [vmem:[%s208 + $0x10] sm:$0xff] %v1649
      %1741 = vst [vmem:[%s208 + $0x18] sm:$0xff] %v1652
      %1742 = vst [vmem:[%s208 + $0x20] sm:$0xff] %v1655
      %1743 = vst [vmem:[%s208 + $0x28] sm:$0xff] %v1658
      %1744 = vst [vmem:[%s208 + $0x30] sm:$0xff] %v1661
      %1745 = vst [vmem:[%s208 + $0x38] sm:$0xff] %v1664
      %1746 = vst [vmem:[%s208 + $0x40] sm:$0xff] %v1667
      %1747 = vst [vmem:[%s208 + $0x48] sm:$0xff] %v1670
      %1748 = vst [vmem:[%s208 + $0x50] sm:$0xff] %v1673
      %1749 = vst [vmem:[%s208 + $0x58] sm:$0xff] %v1676
      %1750 = vst [vmem:[%s208 + $0x60] sm:$0xff] %v1679
      %1751 = vst [vmem:[%s208 + $0x68] sm:$0xff] %v1682
      %1752 = vst [vmem:[%s208 + $0x70] sm:$0xff] %v1685
      %1753 = vst [vmem:[%s208 + $0x78] sm:$0xff] %v1688
      %1754 = vst [vmem:[%s208 + $0x80] sm:$0xff] %v1691
      %1755 = vst [vmem:[%s208 + $0x88] sm:$0xff] %v1694
      %1756 = vst [vmem:[%s208 + $0x90] sm:$0xff] %v1697
      %1757 = vst [vmem:[%s208 + $0x98] sm:$0xff] %v1700
      %1758 = vst [vmem:[%s208 + $0xa0] sm:$0xff] %v1703
      %1759 = vst [vmem:[%s208 + $0xa8] sm:$0xff] %v1706
      %1760 = vst [vmem:[%s208 + $0xb0] sm:$0xff] %v1709
      %1761 = vst [vmem:[%s208 + $0xb8] sm:$0xff] %v1712
      %1762 = vst [vmem:[%s208 + $0xc0] sm:$0xff] %v1715
      %1763 = vst [vmem:[%s208 + $0xc8] sm:$0xff] %v1718
      %1764 = vst [vmem:[%s208 + $0xd0] sm:$0xff] %v1721
      %1765 = vst [vmem:[%s208 + $0xd8] sm:$0xff] %v1724
      %1766 = vst [vmem:[%s208 + $0xe0] sm:$0xff] %v1727
      %1767 = vst [vmem:[%s208 + $0xe8] sm:$0xff] %v1730
      %1768 = vst [vmem:[%s208 + $0xf0] sm:$0xff] %v1733
      %1769 = vst [vmem:[%s208 + $0xf8] sm:$0xff] %v1736
      %v1770 = vadd.f32 %v1643, %v1646
      %v1771 = vadd.f32 %v1770, %v1649
      %v1772 = vadd.f32 %v1771, %v1652
      %v1773 = vadd.f32 %v1772, %v1655
      %v1774 = vadd.f32 %v1773, %v1658
      %v1775 = vadd.f32 %v1774, %v1661
      %v1776 = vadd.f32 %v1775, %v1664
      %v1777 = vadd.f32 %v1776, %v1667
      %v1778 = vadd.f32 %v1777, %v1670
      %v1779 = vadd.f32 %v1778, %v1673
      %v1780 = vadd.f32 %v1779, %v1676
      %v1781 = vadd.f32 %v1780, %v1679
      %v1782 = vadd.f32 %v1781, %v1682
      %v1783 = vadd.f32 %v1782, %v1685
      %v1784 = vadd.f32 %v1783, %v1688
      %v1785 = vadd.f32 %v1784, %v1691
      %v1786 = vadd.f32 %v1785, %v1694
      %v1787 = vadd.f32 %v1786, %v1697
      %v1788 = vadd.f32 %v1787, %v1700
      %v1789 = vadd.f32 %v1788, %v1703
      %v1790 = vadd.f32 %v1789, %v1706
      %v1791 = vadd.f32 %v1790, %v1709
      %v1792 = vadd.f32 %v1791, %v1712
      %v1793 = vadd.f32 %v1792, %v1715
      %v1794 = vadd.f32 %v1793, %v1718
      %v1795 = vadd.f32 %v1794, %v1721
      %v1796 = vadd.f32 %v1795, %v1724
      %v1797 = vadd.f32 %v1796, %v1727
      %v1798 = vadd.f32 %v1797, %v1730
      %v1799 = vadd.f32 %v1798, %v1733
      %v1800 = vadd.f32 %v1799, %v1736
      %v1801 = vrot.slane %v1800, 4
      %v1802 = vadd.f32 %v1800, %v1801
      %v1803 = vrot.slane %v1802, 2
      %v1804 = vadd.f32 %v1802, %v1803
      %v1805 = vrot.slane %v1804, 1
      %v1806 = vadd.f32 %v1804, %v1805
      %1807 = vst [vmem:[%s211] sm:$0x1] %v1806
      %v1808 = vmul.f32 %v1643, %v1643
      %v1809 = vmul.f32 %v1646, %v1646
      %v1810 = vmul.f32 %v1649, %v1649
      %v1811 = vmul.f32 %v1652, %v1652
      %v1812 = vmul.f32 %v1655, %v1655
      %v1813 = vmul.f32 %v1658, %v1658
      %v1814 = vmul.f32 %v1661, %v1661
      %v1815 = vmul.f32 %v1664, %v1664
      %v1816 = vmul.f32 %v1667, %v1667
      %v1817 = vmul.f32 %v1670, %v1670
      %v1818 = vmul.f32 %v1673, %v1673
      %v1819 = vmul.f32 %v1676, %v1676
      %v1820 = vmul.f32 %v1679, %v1679
      %v1821 = vmul.f32 %v1682, %v1682
      %v1822 = vmul.f32 %v1685, %v1685
      %v1823 = vmul.f32 %v1688, %v1688
      %v1824 = vmul.f32 %v1691, %v1691
      %v1825 = vmul.f32 %v1694, %v1694
      %v1826 = vmul.f32 %v1697, %v1697
      %v1827 = vmul.f32 %v1700, %v1700
      %v1828 = vmul.f32 %v1703, %v1703
      %v1829 = vmul.f32 %v1706, %v1706
      %v1830 = vmul.f32 %v1709, %v1709
      %v1831 = vmul.f32 %v1712, %v1712
      %v1832 = vmul.f32 %v1715, %v1715
      %v1833 = vmul.f32 %v1718, %v1718
      %v1834 = vmul.f32 %v1721, %v1721
      %v1835 = vmul.f32 %v1724, %v1724
      %v1836 = vmul.f32 %v1727, %v1727
      %v1837 = vmul.f32 %v1730, %v1730
      %v1838 = vmul.f32 %v1733, %v1733
      %v1839 = vmul.f32 %v1736, %v1736
      %v1840 = vadd.f32 %v1808, %v1809
      %v1841 = vadd.f32 %v1840, %v1810
      %v1842 = vadd.f32 %v1841, %v1811
      %v1843 = vadd.f32 %v1842, %v1812
      %v1844 = vadd.f32 %v1843, %v1813
      %v1845 = vadd.f32 %v1844, %v1814
      %v1846 = vadd.f32 %v1845, %v1815
      %v1847 = vadd.f32 %v1846, %v1816
      %v1848 = vadd.f32 %v1847, %v1817
      %v1849 = vadd.f32 %v1848, %v1818
      %v1850 = vadd.f32 %v1849, %v1819
      %v1851 = vadd.f32 %v1850, %v1820
      %v1852 = vadd.f32 %v1851, %v1821
      %v1853 = vadd.f32 %v1852, %v1822
      %v1854 = vadd.f32 %v1853, %v1823
      %v1855 = vadd.f32 %v1854, %v1824
      %v1856 = vadd.f32 %v1855, %v1825
      %v1857 = vadd.f32 %v1856, %v1826
      %v1858 = vadd.f32 %v1857, %v1827
      %v1859 = vadd.f32 %v1858, %v1828
      %v1860 = vadd.f32 %v1859, %v1829
      %v1861 = vadd.f32 %v1860, %v1830
      %v1862 = vadd.f32 %v1861, %v1831
      %v1863 = vadd.f32 %v1862, %v1832
      %v1864 = vadd.f32 %v1863, %v1833
      %v1865 = vadd.f32 %v1864, %v1834
      %v1866 = vadd.f32 %v1865, %v1835
      %v1867 = vadd.f32 %v1866, %v1836
      %v1868 = vadd.f32 %v1867, %v1837
      %v1869 = vadd.f32 %v1868, %v1838
      %v1870 = vadd.f32 %v1869, %v1839
      %v1871 = vrot.slane %v1870, 4
      %v1872 = vadd.f32 %v1870, %v1871
      %v1873 = vrot.slane %v1872, 2
      %v1874 = vadd.f32 %v1872, %v1873
      %v1875 = vrot.slane %v1874, 1
      %v1876 = vadd.f32 %v1874, %v1875
      %1877 = vst [vmem:[%s214] sm:$0x1] %v1876
      %p1878 = scmp.lt.s32.totalorder %s16, 1
      %s1879 = scalar_select %p1878, %s16, 1
      %s1880 = smul.addr %s1879, 32
      %s1881 = smul.addr %s1880, 8
      %s1882 = scalar_lea.vmem %s2, %s1881
      %p1883 = scmp.lt.s32.totalorder %s16, 1
      %s1884 = scalar_select %p1883, %s16, 1
      %s1885 = scalar_lea.vmem %s3, %s1884
      %p1886 = scmp.lt.s32.totalorder %s16, 1
      %s1887 = scalar_select %p1886, %s16, 1
      %s1888 = scalar_lea.vmem %s4, %s1887
      // Predicated region
      $region29: #{basic_conv2d_forward.2} parent=27 // pred_check
        %p1889 = pneg %p81
      $region30: #{basic_conv2d_forward.2} parent=27 // pred_check_branch
        %1891 = sbr.rel (%p1889) target = $region32
      $region31: #{basic_conv2d_forward.2} parent=27 // pred_region
        _
      $region32: #{basic_conv2d_forward.2} parent=27 // pred_fallthru
        _
      // Predicated region
      $region33: #{basic_conv2d_forward.2} parent=27 // pred_check
        %p1892 = pneg %p107
      $region34: #{basic_conv2d_forward.2} parent=27 // pred_check_branch
        %1894 = sbr.rel (%p1892) target = $region36
      $region35: #{basic_conv2d_forward.2} parent=27 // pred_region
        _
      $region36: #{basic_conv2d_forward.2} parent=27 // pred_fallthru
        _
      // Predicated region
      $region37: #{basic_conv2d_forward.2} parent=27 // pred_check
        %p1895 = pneg %p133
      $region38: #{basic_conv2d_forward.2} parent=27 // pred_check_branch
        %1897 = sbr.rel (%p1895) target = $region40
      $region39: #{basic_conv2d_forward.2} parent=27 // pred_region
        _
      $region40: #{basic_conv2d_forward.2} parent=27 // pred_fallthru
        _
    $region28: #{basic_conv2d_forward.2} parent=5 // pred_fallthru
      _
    %p1898 = scmp.le.s32.totalorder 2, %s11
    // Predicated region
    $region41: #{basic_conv2d_forward.2} parent=5 // pred_check
      %p1899 = pneg %p1898
    $region42: #{basic_conv2d_forward.2} parent=5 // pred_check_branch
      %1901 = sbr.rel (%p1899) target = $region44
    $region43: #{basic_conv2d_forward.2} parent=5 // pred_region
      %s1902 = ssub.s32 %s11, 2
      // Predicated region
      $region45: #{basic_conv2d_forward.2} parent=43 // pred_check
        %p1903 = pneg %p87
      $region46: #{basic_conv2d_forward.2} parent=43 // pred_check_branch
        %1905 = sbr.rel (%p1903) target = $region48
      $region47: #{basic_conv2d_forward.2} parent=43 // pred_region
        %p1906 = scmp.lt.s32.totalorder %s17, 1
        %s1907 = scalar_select %p1906, %s17, 1
        %s1908 = smul.addr %s1907, 32
        %s1909 = smul.addr %s1908, 8
        %s1910 = scalar_lea.vmem %s2, %s1909
      $region48: #{basic_conv2d_forward.2} parent=43 // pred_fallthru
        _
      // Predicated region
      $region49: #{basic_conv2d_forward.2} parent=43 // pred_check
        %p1911 = pneg %p113
      $region50: #{basic_conv2d_forward.2} parent=43 // pred_check_branch
        %1913 = sbr.rel (%p1911) target = $region52
      $region51: #{basic_conv2d_forward.2} parent=43 // pred_region
        %p1914 = scmp.lt.s32.totalorder %s17, 1
        %s1915 = scalar_select %p1914, %s17, 1
        %s1916 = scalar_lea.vmem %s3, %s1915
      $region52: #{basic_conv2d_forward.2} parent=43 // pred_fallthru
        _
      // Predicated region
      $region53: #{basic_conv2d_forward.2} parent=43 // pred_check
        %p1917 = pneg %p139
      $region54: #{basic_conv2d_forward.2} parent=43 // pred_check_branch
        %1919 = sbr.rel (%p1917) target = $region56
      $region55: #{basic_conv2d_forward.2} parent=43 // pred_region
        %p1920 = scmp.lt.s32.totalorder %s17, 1
        %s1921 = scalar_select %p1920, %s17, 1
        %s1922 = scalar_lea.vmem %s4, %s1921
      $region56: #{basic_conv2d_forward.2} parent=43 // pred_fallthru
        _
    $region44: #{basic_conv2d_forward.2} parent=5 // pred_fallthru
      _
  $region6: #{basic_conv2d_forward.2} parent=0 // loop_footer
    %s15 = sadd.s32 1, %s11
  $region7: #{basic_conv2d_forward.2} parent=0 // loop_footer_branch
    %10 = sbr.rel target = $region3
  $region8: #{basic_conv2d_forward.2} parent=0 // loop_exit
    _

</llo_original>
